<compile_context>
chip_gen: v5e
topology: v5e:2x2
jax: 0.10.0
libtpu: 0.0.40
codegen_flags: <defaults>
</compile_context>

<pallas_src>
import jax
import jax.numpy as jnp
from jax.experimental import pallas as pl
from jax.experimental.pallas import tpu as pltpu

# ---------------------------------------------------------------------------
# Model dimensions (small, consistent with the module's constructor)
# ---------------------------------------------------------------------------
B = 4            # batch (logical)
B_PAD = 8        # batch padded to one full sublane tile
T = 8            # n_steps
F_T = 12         # n_t_features (temporal features)
F_S = 16         # n_features   (static features)
H1 = 32          # rnn_hidden_size_1 (GRU-D)
H2 = 32          # rnn_hidden_size_2 (second GRU layer, num_layer > 1)
MLP_HID = 32     # static encoder hidden
MLP_OUT = 16     # static_encoder.out_features
FC_DIM = 32      # fully_connected_layer.dimension
N_CLASSES = 5    # n_classes (flat classifier)

TB = T * B_PAD               # 64 time-major rows
IN_COLS = 4 * F_T            # [v | m | d | xl] packed along lanes -> 48
IN_ROWS = TB + B_PAD + 8     # 64 temporal + 8 static-x + 8 mean rows = 80


# ---------------------------------------------------------------------------
# Parameter-slab layout: one (336, 128) f32 slab, every block on an 8-row
# boundary so all in-kernel views are sublane-tile aligned.
# ---------------------------------------------------------------------------
def _r8(n):
    return -(-n // 8) * 8


_LAYOUT = [
    # name        rows            cols
    ('mlp_w1',    F_S,            MLP_HID),
    ('mlp_w2',    MLP_HID,        MLP_OUT),
    ('attn_w',    F_T,            F_T),
    ('w_g',       F_T,            F_T + H1),    # [wgx | wgh] fused decay weight
    ('w3',        F_T,            3 * H1),
    ('v3',        F_T,            3 * H1),
    ('u3_zr',     H1,             2 * H1),      # GRU-D hidden weight, z/r cols
    ('u3_c',      H1,             H1),          # GRU-D hidden weight, candidate
    ('wi3',       H1,             3 * H2),      # layer-2 GRU input weight
    ('wh3',       H2,             3 * H2),      # layer-2 GRU hidden weight
    ('fc_ws',     MLP_OUT,        FC_DIM),      # fc weight, static half
    ('fc_wh',     H2,             FC_DIM),      # fc weight, hidden half
    ('cls_w',     FC_DIM,         N_CLASSES),
    ('bias',      16,             128),         # all biases + padding, 1 row each
]
ROW_OFF = {}
_r = 0
for _name, _rows, _cols in _LAYOUT:
    ROW_OFF[_name] = _r
    _r += _r8(_rows)
SLAB_ROWS = _r               # 336
SLAB_COLS = 128
SHAPE = {n: (r, c) for n, r, c in _LAYOUT}

# rows inside the 'bias' block
B_MLP1, B_MLP2, B_ATTN, B_G, B_3, B_I3, B_H3, B_FC, B_CLS = range(9)


# ---------------------------------------------------------------------------
# Single fused forward kernel
# ---------------------------------------------------------------------------
def _fused_forward_kernel(tin_ref, w_ref, out_ref):
    f32 = jnp.float32

    def dot(a, b):
        return jnp.dot(a, b, preferred_element_type=f32)

    def wblk(name):
        r = ROW_OFF[name]
        rows, cols = SHAPE[name]
        return w_ref[r:r + rows, 0:cols]          # static, tile-aligned view

    bias = wblk('bias')                           # (16, 128), loaded once

    def brow(i, n):
        return bias[i:i + 1, 0:n]                 # (1, n) broadcast row

    # ---- packed inputs ----------------------------------------------------
    v = tin_ref[0:TB, 0:F_T]
    m = tin_ref[0:TB, F_T:2 * F_T]
    d = tin_ref[0:TB, 2 * F_T:3 * F_T]
    xl = tin_ref[0:TB, 3 * F_T:4 * F_T]
    xs = tin_ref[TB:TB + B_PAD, 0:F_S]
    mean = tin_ref[TB + B_PAD:TB + B_PAD + 1, 0:F_T]

    # ---- static encoder: 2-layer ReLU MLP ----------------------------------
    h = jnp.maximum(dot(xs, wblk('mlp_w1')) + brow(B_MLP1, MLP_HID), 0.0)
    static_out = jnp.maximum(dot(h, wblk('mlp_w2')) + brow(B_MLP2, MLP_OUT), 0.0)

    # ---- pre-spatial attention: softmax(v @ W + b) * v ----------------------
    # TODO(synk): softmax-over-features gate assumed (PreSpatialAttn not given)
    e = dot(v, wblk('attn_w')) + brow(B_ATTN, F_T)
    e = e - jnp.max(e, axis=-1, keepdims=True)
    p = jnp.exp(e)
    inv = pl.reciprocal(jnp.sum(p, axis=-1, keepdims=True), approx=True)
    av = (p * inv) * v

    # ---- GRU-D input-side terms, hoisted out of the time loop --------------
    # fused decay dot: d @ [wgx | wgh] in one MXU op
    gdec = jnp.exp(-jnp.maximum(dot(d, wblk('w_g')) + brow(B_G, F_T + H1), 0.0))
    gamma_x = gdec[:, 0:F_T]
    gamma_h = gdec[:, F_T:F_T + H1]
    x_hat = m * av + (1.0 - m) * (gamma_x * xl + (1.0 - gamma_x) * mean)
    gin = dot(x_hat, wblk('w3')) + dot(m, wblk('v3')) + brow(B_3, 3 * H1)

    u3zr = wblk('u3_zr')
    u3c = wblk('u3_c')
    wi3 = wblk('wi3')
    wh3 = wblk('wh3')
    bi3 = brow(B_I3, 3 * H2)
    bh3 = brow(B_H3, 3 * H2)

    # ---- recurrence: GRU-D (layer 1) + GRU (layer 2), unrolled over T ------
    # Every per-step slice below starts on an 8-row (full sublane tile)
    # boundary thanks to B_PAD = 8.
    h1 = jnp.zeros((B_PAD, H1), f32)
    h2 = jnp.zeros((B_PAD, H2), f32)
    for t in range(T):
        lo = t * B_PAD
        g_t = gin[lo:lo + B_PAD, :]                         # (8, 3*H1)

        # layer-2 hidden dot only depends on the PREVIOUS h2 -> issue it at
        # the top of the step, off the h1 critical chain.  (Fusing it with the
        # h1 dot as [h1|h2]@[[Wi],[Wh]] would need a per-step lane concat and
        # would not shorten the dependency chain, so it is intentionally not
        # done.)
        gh2 = dot(h2, wh3) + bh3                            # (8, 3*H2)

        # GRU-D cell (TODO(synk): gate packing [z|r|c] assumed)
        h1d = gamma_h[lo:lo + B_PAD, :] * h1
        ghzr = dot(h1d, u3zr)                               # (8, 2*H1)
        s_zr = jax.nn.sigmoid(g_t[:, 0:2 * H1] + ghzr)      # packed z|r sigmoid
        z = s_zr[:, 0:H1]
        r = s_zr[:, H1:2 * H1]
        c = jnp.tanh(g_t[:, 2 * H1:3 * H1] + dot(r * h1d, u3c))
        h1 = (1.0 - z) * h1d + z * c

        # standard GRU cell (PyTorch gate order r, z, n)
        gi = dot(h1, wi3) + bi3                             # (8, 3*H2)
        s_rz = jax.nn.sigmoid(gi[:, 0:2 * H2] + gh2[:, 0:2 * H2])  # packed r|z
        r2 = s_rz[:, 0:H2]
        z2 = s_rz[:, H2:2 * H2]
        n2 = jnp.tanh(gi[:, 2 * H2:3 * H2] + r2 * gh2[:, 2 * H2:3 * H2])
        h2 = (1.0 - z2) * n2 + z2 * h2

    # ---- head: relu(fc(cat(static, h2))) -> dropout(id) -> classifier ------
    # concat folded into the fc layer via a split weight (fc_ws | fc_wh)
    fc_out = jnp.maximum(dot(static_out, wblk('fc_ws'))
                         + dot(h2, wblk('fc_wh'))
                         + brow(B_FC, FC_DIM), 0.0)
    logits = dot(fc_out, wblk('cls_w')) + brow(B_CLS, N_CLASSES)
    out_ref[...] = logits.astype(out_ref.dtype)


# ---------------------------------------------------------------------------
# Parameters (deterministic synthetic init) and slab packing
# ---------------------------------------------------------------------------
def init_params(key):
    ks = iter(jax.random.split(key, 32))

    def w(shape, scale=0.1):
        return jax.random.normal(next(ks), shape, jnp.float32) * scale

    p = {}
    p['mlp_w1'] = w((F_S, MLP_HID)); p['mlp_b1'] = w((MLP_HID,))
    p['mlp_w2'] = w((MLP_HID, MLP_OUT)); p['mlp_b2'] = w((MLP_OUT,))
    p['attn_w'] = w((F_T, F_T)); p['attn_b'] = w((F_T,))
    p['grud_wgx'] = w((F_T, F_T)); p['grud_bgx'] = w((F_T,))
    p['grud_wgh'] = w((F_T, H1)); p['grud_bgh'] = w((H1,))
    p['grud_w3'] = w((F_T, 3 * H1)); p['grud_v3'] = w((F_T, 3 * H1))
    p['grud_b3'] = w((3 * H1,))
    p['grud_u3'] = w((H1, 3 * H1))
    p['gru_wi3'] = w((H1, 3 * H2)); p['gru_bi3'] = w((3 * H2,))
    p['gru_wh3'] = w((H2, 3 * H2)); p['gru_bh3'] = w((3 * H2,))
    p['fc_ws'] = w((MLP_OUT, FC_DIM)); p['fc_wh'] = w((H2, FC_DIM))
    p['fc_b'] = w((FC_DIM,))
    p['cls_w'] = w((FC_DIM, N_CLASSES)); p['cls_b'] = w((N_CLASSES,))
    return p


def pack_params(p):
    """Pack every weight/bias into one tile-aligned (336, 128) f32 slab."""
    slab = jnp.zeros((SLAB_ROWS, SLAB_COLS), jnp.float32)

    def put(name, mat):
        nonlocal slab
        mat = jnp.asarray(mat, jnp.float32)
        r = ROW_OFF[name]
        slab = slab.at[r:r + mat.shape[0], 0:mat.shape[1]].set(mat)

    put('mlp_w1', p['mlp_w1'])
    put('mlp_w2', p['mlp_w2'])
    put('attn_w', p['attn_w'])
    put('w_g', jnp.concatenate([p['grud_wgx'], p['grud_wgh']], axis=1))
    put('w3', p['grud_w3'])
    put('v3', p['grud_v3'])
    put('u3_zr', p['grud_u3'][:, :2 * H1])
    put('u3_c', p['grud_u3'][:, 2 * H1:])
    put('wi3', p['gru_wi3'])
    put('wh3', p['gru_wh3'])
    put('fc_ws', p['fc_ws'])
    put('fc_wh', p['fc_wh'])
    put('cls_w', p['cls_w'])

    bias = jnp.zeros((16, SLAB_COLS), jnp.float32)

    def bput(row, vec):
        nonlocal bias
        vec = jnp.asarray(vec, jnp.float32).reshape(-1)
        bias = bias.at[row, 0:vec.shape[0]].set(vec)

    bput(B_MLP1, p['mlp_b1'])
    bput(B_MLP2, p['mlp_b2'])
    bput(B_ATTN, p['attn_b'])
    bput(B_G, jnp.concatenate([p['grud_bgx'], p['grud_bgh']]))
    bput(B_3, p['grud_b3'])
    bput(B_I3, p['gru_bi3'])
    bput(B_H3, p['gru_bh3'])
    bput(B_FC, p['fc_b'])
    bput(B_CLS, p['cls_b'])
    put('bias', bias)
    return slab


# ---------------------------------------------------------------------------
# Forward wrapper: builds the single packed input slab and calls the kernel.
# ---------------------------------------------------------------------------
def _cost_estimate():
    flops = 2 * (
        B_PAD * F_S * MLP_HID + B_PAD * MLP_HID * MLP_OUT
        + TB * F_T * F_T
        + TB * F_T * (F_T + H1)
        + 2 * TB * F_T * (3 * H1)
        + T * (B_PAD * H1 * 2 * H1 + B_PAD * H1 * H1 + 2 * B_PAD * H1 * 3 * H2)
        + B_PAD * MLP_OUT * FC_DIM + B_PAD * H2 * FC_DIM
        + B_PAD * FC_DIM * N_CLASSES)
    transcendentals = (TB * F_T + TB + TB * (F_T + H1)
                       + T * B_PAD * (2 * H1 + H1 + 2 * H2 + H2))
    bytes_accessed = 4 * (IN_ROWS * IN_COLS + SLAB_ROWS * SLAB_COLS
                          + B_PAD * N_CLASSES)
    return pl.CostEstimate(flops=flops, transcendentals=transcendentals,
                           bytes_accessed=bytes_accessed)


@jax.jit
def forward(w_slab, inputs):
    x = inputs['X']                        # (B, F_S)
    values = inputs['X_t']                 # (B, T, F_T)
    masks = inputs['X_t_mask']             # (B, T, F_T)
    deltas = inputs['deltaT_t']            # (B, T, F_T)
    emp_mean = inputs['empirical_mean']    # (F_T,)
    x_locf = inputs['X_t_filledLOCF']      # (B, T, F_T)

    # One packed, tile-aligned input slab:
    #   rows 0:64   time-major [v | m | d | xl] lanes, batch padded 4 -> 8
    #   rows 64:72  static features (lanes 0:16)
    #   rows 72:80  empirical mean (row 72, lanes 0:12)
    tm = jnp.concatenate([values, masks, deltas, x_locf], axis=-1)   # (B,T,48)
    tm = jnp.transpose(tm, (1, 0, 2))                                # (T,B,48)
    tm = jnp.pad(tm, ((0, 0), (0, B_PAD - B), (0, 0)))               # (T,8,48)
    tm = tm.reshape(TB, IN_COLS)
    x_rows = jnp.pad(x, ((0, B_PAD - B), (0, IN_COLS - F_S)))        # (8,48)
    mean_rows = jnp.pad(emp_mean.reshape(1, F_T),
                        ((0, 7), (0, IN_COLS - F_T)))                # (8,48)
    tin = jnp.concatenate([tm, x_rows, mean_rows], axis=0)           # (80,48)

    # Single fused kernel, 3 DMAs total (input slab, param slab, output);
    # no grid, everything resident in VMEM (~200 KiB working set).
    logits = pl.pallas_call(
        _fused_forward_kernel,
        out_shape=jax.ShapeDtypeStruct((B_PAD, N_CLASSES), jnp.float32),
        in_specs=[pl.BlockSpec(memory_space=pltpu.MemorySpace.VMEM),
                  pl.BlockSpec(memory_space=pltpu.MemorySpace.VMEM)],
        out_specs=pl.BlockSpec(memory_space=pltpu.MemorySpace.VMEM),
        cost_estimate=_cost_estimate(),
    )(tin, w_slab)
    return logits[:B]


# ---------------------------------------------------------------------------
if __name__ == "__main__":
    key = jax.random.PRNGKey(0)
    kparam, kin = jax.random.split(key)
    params = init_params(kparam)
    # Pack once, off the hot path (in a real model this is done at load time).
    w_slab = jax.block_until_ready(pack_params(params))

    kx, kv, km, kd, kl = jax.random.split(kin, 5)
    X = jax.random.normal(kx, (B, F_S), jnp.float32)
    X_t = jax.random.normal(kv, (B, T, F_T), jnp.float32)
    X_t_mask = (jax.random.uniform(km, (B, T, F_T)) > 0.3).astype(jnp.float32)
    deltaT_t = jax.random.uniform(kd, (B, T, F_T), jnp.float32, 0.0, 2.0)
    empirical_mean = jnp.mean(X_t, axis=(0, 1))
    X_t_filledLOCF = jax.random.normal(kl, (B, T, F_T), jnp.float32)

    inputs = {
        'X': X,
        'X_t': X_t,
        'X_t_mask': X_t_mask,
        'deltaT_t': deltaT_t,
        'empirical_mean': empirical_mean,
        'X_t_filledLOCF': X_t_filledLOCF,
    }

    logits = jax.block_until_ready(forward(w_slab, inputs))

    assert logits.shape == (B, N_CLASSES)
    assert bool(jnp.all(jnp.isfinite(logits)))
    print("KERNEL_OK")
</pallas_src>

<mosaic_0001>
module attributes {stable_mosaic.version = 11 : i64} {
  func.func @_fused_forward_kernel(%arg0: memref<80x48xf32, #tpu.memory_space<vmem>>, %arg1: memref<336x128xf32, #tpu.memory_space<vmem>>, %arg2: memref<8x5xf32, #tpu.memory_space<vmem>>) attributes {dimension_semantics = [], scalar_prefetch = 0 : i64, scratch_operands = 0 : i64, tpu.core_type = #tpu.core_type<tc>} {
    %c320 = arith.constant 320 : index
    %c0 = arith.constant 0 : index
    %0 = vector.load %arg1[%c320, %c0] : memref<336x128xf32, #tpu.memory_space<vmem>>, vector<16x128xf32>
    %c0_0 = arith.constant 0 : index
    %c0_1 = arith.constant 0 : index
    %1 = vector.load %arg0[%c0_0, %c0_1] : memref<80x48xf32, #tpu.memory_space<vmem>>, vector<64x12xf32>
    %c0_2 = arith.constant 0 : index
    %c12 = arith.constant 12 : index
    %2 = vector.load %arg0[%c0_2, %c12] : memref<80x48xf32, #tpu.memory_space<vmem>>, vector<64x12xf32>
    %c0_3 = arith.constant 0 : index
    %c24 = arith.constant 24 : index
    %3 = vector.load %arg0[%c0_3, %c24] : memref<80x48xf32, #tpu.memory_space<vmem>>, vector<64x12xf32>
    %c0_4 = arith.constant 0 : index
    %c36 = arith.constant 36 : index
    %4 = vector.load %arg0[%c0_4, %c36] : memref<80x48xf32, #tpu.memory_space<vmem>>, vector<64x12xf32>
    %c64 = arith.constant 64 : index
    %c0_5 = arith.constant 0 : index
    %5 = vector.load %arg0[%c64, %c0_5] : memref<80x48xf32, #tpu.memory_space<vmem>>, vector<8x16xf32>
    %c72 = arith.constant 72 : index
    %c0_6 = arith.constant 0 : index
    %6 = vector.load %arg0[%c72, %c0_6] : memref<80x48xf32, #tpu.memory_space<vmem>>, vector<1x12xf32>
    %c0_7 = arith.constant 0 : index
    %c0_8 = arith.constant 0 : index
    %7 = vector.load %arg1[%c0_7, %c0_8] : memref<336x128xf32, #tpu.memory_space<vmem>>, vector<16x32xf32>
    %cst = arith.constant dense<0.000000e+00> : vector<8x32xf32>
    %8 = tpu.matmul %5, %7, %cst {dimension_numbers = #tpu.dot_dimension_numbers<[1], [0], [0], [1], [0, 0, 1, 1], [], []>} : vector<8x16xf32>, vector<16x32xf32>, vector<8x32xf32> -> vector<8x32xf32>
    %9 = vector.extract_strided_slice %0 {offsets = [0, 0], sizes = [1, 32], strides = [1, 1]} : vector<16x128xf32> to vector<1x32xf32>
    %10 = vector.broadcast %9 : vector<1x32xf32> to vector<8x32xf32>
    %11 = arith.addf %8, %10 : vector<8x32xf32>
    %cst_9 = arith.constant 0.000000e+00 : f32
    %12 = vector.broadcast %cst_9 : f32 to vector<8x32xf32>
    %13 = arith.maximumf %11, %12 : vector<8x32xf32>
    %c16 = arith.constant 16 : index
    %c0_10 = arith.constant 0 : index
    %14 = vector.load %arg1[%c16, %c0_10] : memref<336x128xf32, #tpu.memory_space<vmem>>, vector<32x16xf32>
    %cst_11 = arith.constant dense<0.000000e+00> : vector<8x16xf32>
    %15 = tpu.matmul %13, %14, %cst_11 {dimension_numbers = #tpu.dot_dimension_numbers<[1], [0], [0], [1], [0, 0, 1, 1], [], []>} : vector<8x32xf32>, vector<32x16xf32>, vector<8x16xf32> -> vector<8x16xf32>
    %16 = vector.extract_strided_slice %0 {offsets = [1, 0], sizes = [1, 16], strides = [1, 1]} : vector<16x128xf32> to vector<1x16xf32>
    %17 = vector.broadcast %16 : vector<1x16xf32> to vector<8x16xf32>
    %18 = arith.addf %15, %17 : vector<8x16xf32>
    %cst_12 = arith.constant 0.000000e+00 : f32
    %19 = vector.broadcast %cst_12 : f32 to vector<8x16xf32>
    %20 = arith.maximumf %18, %19 : vector<8x16xf32>
    %c48 = arith.constant 48 : index
    %c0_13 = arith.constant 0 : index
    %21 = vector.load %arg1[%c48, %c0_13] : memref<336x128xf32, #tpu.memory_space<vmem>>, vector<12x12xf32>
    %cst_14 = arith.constant dense<0.000000e+00> : vector<64x12xf32>
    %22 = tpu.matmul %1, %21, %cst_14 {dimension_numbers = #tpu.dot_dimension_numbers<[1], [0], [0], [1], [0, 0, 1, 1], [], []>} : vector<64x12xf32>, vector<12x12xf32>, vector<64x12xf32> -> vector<64x12xf32>
    %23 = vector.extract_strided_slice %0 {offsets = [2, 0], sizes = [1, 12], strides = [1, 1]} : vector<16x128xf32> to vector<1x12xf32>
    %24 = vector.broadcast %23 : vector<1x12xf32> to vector<64x12xf32>
    %25 = arith.addf %22, %24 : vector<64x12xf32>
    %cst_15 = arith.constant dense<0xFF800000> : vector<64xf32>
    %26 = vector.multi_reduction <maximumf>, %25, %cst_15 [1] : vector<64x12xf32> to vector<64xf32>
    %27 = vector.shape_cast %26 : vector<64xf32> to vector<64x1xf32>
    %28 = vector.broadcast %27 : vector<64x1xf32> to vector<64x12xf32>
    %29 = arith.subf %25, %28 : vector<64x12xf32>
    %30 = math.exp %29 : vector<64x12xf32>
    %cst_16 = arith.constant dense<0.000000e+00> : vector<64xf32>
    %31 = vector.multi_reduction <add>, %30, %cst_16 [1] : vector<64x12xf32> to vector<64xf32>
    %32 = vector.shape_cast %31 : vector<64xf32> to vector<64x1xf32>
    %33 = tpu.reciprocal %32 {approx = true} : vector<64x1xf32> -> vector<64x1xf32>
    %34 = vector.broadcast %33 : vector<64x1xf32> to vector<64x12xf32>
    %35 = arith.mulf %30, %34 : vector<64x12xf32>
    %36 = arith.mulf %35, %1 : vector<64x12xf32>
    %c64_17 = arith.constant 64 : index
    %c0_18 = arith.constant 0 : index
    %37 = vector.load %arg1[%c64_17, %c0_18] : memref<336x128xf32, #tpu.memory_space<vmem>>, vector<12x44xf32>
    %cst_19 = arith.constant dense<0.000000e+00> : vector<64x44xf32>
    %38 = tpu.matmul %3, %37, %cst_19 {dimension_numbers = #tpu.dot_dimension_numbers<[1], [0], [0], [1], [0, 0, 1, 1], [], []>} : vector<64x12xf32>, vector<12x44xf32>, vector<64x44xf32> -> vector<64x44xf32>
    %39 = vector.extract_strided_slice %0 {offsets = [3, 0], sizes = [1, 44], strides = [1, 1]} : vector<16x128xf32> to vector<1x44xf32>
    %40 = vector.broadcast %39 : vector<1x44xf32> to vector<64x44xf32>
    %41 = arith.addf %38, %40 : vector<64x44xf32>
    %cst_20 = arith.constant 0.000000e+00 : f32
    %42 = vector.broadcast %cst_20 : f32 to vector<64x44xf32>
    %43 = arith.maximumf %41, %42 : vector<64x44xf32>
    %cst_21 = arith.constant 0.000000e+00 : f32
    %44 = vector.broadcast %cst_21 : f32 to vector<64x44xf32>
    %45 = arith.subf %44, %43 : vector<64x44xf32>
    %46 = math.exp %45 : vector<64x44xf32>
    %47 = vector.extract_strided_slice %46 {offsets = [0, 0], sizes = [64, 12], strides = [1, 1]} : vector<64x44xf32> to vector<64x12xf32>
    %48 = vector.extract_strided_slice %46 {offsets = [0, 12], sizes = [64, 32], strides = [1, 1]} : vector<64x44xf32> to vector<64x32xf32>
    %49 = arith.mulf %2, %36 : vector<64x12xf32>
    %cst_22 = arith.constant 1.000000e+00 : f32
    %50 = vector.broadcast %cst_22 : f32 to vector<64x12xf32>
    %51 = arith.subf %50, %2 : vector<64x12xf32>
    %52 = arith.mulf %47, %4 : vector<64x12xf32>
    %cst_23 = arith.constant 1.000000e+00 : f32
    %53 = vector.broadcast %cst_23 : f32 to vector<64x12xf32>
    %54 = arith.subf %53, %47 : vector<64x12xf32>
    %55 = vector.broadcast %6 : vector<1x12xf32> to vector<64x12xf32>
    %56 = arith.mulf %54, %55 : vector<64x12xf32>
    %57 = arith.addf %52, %56 : vector<64x12xf32>
    %58 = arith.mulf %51, %57 : vector<64x12xf32>
    %59 = arith.addf %49, %58 : vector<64x12xf32>
    %c80 = arith.constant 80 : index
    %c0_24 = arith.constant 0 : index
    %60 = vector.load %arg1[%c80, %c0_24] : memref<336x128xf32, #tpu.memory_space<vmem>>, vector<12x96xf32>
    %cst_25 = arith.constant dense<0.000000e+00> : vector<64x96xf32>
    %61 = tpu.matmul %59, %60, %cst_25 {dimension_numbers = #tpu.dot_dimension_numbers<[1], [0], [0], [1], [0, 0, 1, 1], [], []>} : vector<64x12xf32>, vector<12x96xf32>, vector<64x96xf32> -> vector<64x96xf32>
    %c96 = arith.constant 96 : index
    %c0_26 = arith.constant 0 : index
    %62 = vector.load %arg1[%c96, %c0_26] : memref<336x128xf32, #tpu.memory_space<vmem>>, vector<12x96xf32>
    %cst_27 = arith.constant dense<0.000000e+00> : vector<64x96xf32>
    %63 = tpu.matmul %2, %62, %cst_27 {dimension_numbers = #tpu.dot_dimension_numbers<[1], [0], [0], [1], [0, 0, 1, 1], [], []>} : vector<64x12xf32>, vector<12x96xf32>, vector<64x96xf32> -> vector<64x96xf32>
    %64 = arith.addf %61, %63 : vector<64x96xf32>
    %65 = vector.extract_strided_slice %0 {offsets = [4, 0], sizes = [1, 96], strides = [1, 1]} : vector<16x128xf32> to vector<1x96xf32>
    %66 = vector.broadcast %65 : vector<1x96xf32> to vector<64x96xf32>
    %67 = arith.addf %64, %66 : vector<64x96xf32>
    %c112 = arith.constant 112 : index
    %c0_28 = arith.constant 0 : index
    %68 = vector.load %arg1[%c112, %c0_28] : memref<336x128xf32, #tpu.memory_space<vmem>>, vector<32x64xf32>
    %c144 = arith.constant 144 : index
    %c0_29 = arith.constant 0 : index
    %69 = vector.load %arg1[%c144, %c0_29] : memref<336x128xf32, #tpu.memory_space<vmem>>, vector<32x32xf32>
    %c176 = arith.constant 176 : index
    %c0_30 = arith.constant 0 : index
    %70 = vector.load %arg1[%c176, %c0_30] : memref<336x128xf32, #tpu.memory_space<vmem>>, vector<32x96xf32>
    %c208 = arith.constant 208 : index
    %c0_31 = arith.constant 0 : index
    %71 = vector.load %arg1[%c208, %c0_31] : memref<336x128xf32, #tpu.memory_space<vmem>>, vector<32x96xf32>
    %72 = vector.extract_strided_slice %0 {offsets = [5, 0], sizes = [1, 96], strides = [1, 1]} : vector<16x128xf32> to vector<1x96xf32>
    %73 = vector.extract_strided_slice %0 {offsets = [6, 0], sizes = [1, 96], strides = [1, 1]} : vector<16x128xf32> to vector<1x96xf32>
    %cst_32 = arith.constant 0.000000e+00 : f32
    %74 = vector.broadcast %cst_32 : f32 to vector<8x32xf32>
    %cst_33 = arith.constant 0.000000e+00 : f32
    %75 = vector.broadcast %cst_33 : f32 to vector<8x32xf32>
    %76 = vector.extract_strided_slice %67 {offsets = [0, 0], sizes = [8, 96], strides = [1, 1]} : vector<64x96xf32> to vector<8x96xf32>
    %cst_34 = arith.constant dense<0.000000e+00> : vector<8x96xf32>
    %77 = tpu.matmul %75, %71, %cst_34 {dimension_numbers = #tpu.dot_dimension_numbers<[1], [0], [0], [1], [0, 0, 1, 1], [], []>} : vector<8x32xf32>, vector<32x96xf32>, vector<8x96xf32> -> vector<8x96xf32>
    %78 = vector.broadcast %73 : vector<1x96xf32> to vector<8x96xf32>
    %79 = arith.addf %77, %78 : vector<8x96xf32>
    %80 = vector.extract_strided_slice %48 {offsets = [0, 0], sizes = [8, 32], strides = [1, 1]} : vector<64x32xf32> to vector<8x32xf32>
    %81 = arith.mulf %80, %74 : vector<8x32xf32>
    %cst_35 = arith.constant dense<0.000000e+00> : vector<8x64xf32>
    %82 = tpu.matmul %81, %68, %cst_35 {dimension_numbers = #tpu.dot_dimension_numbers<[1], [0], [0], [1], [0, 0, 1, 1], [], []>} : vector<8x32xf32>, vector<32x64xf32>, vector<8x64xf32> -> vector<8x64xf32>
    %83 = vector.extract_strided_slice %76 {offsets = [0, 0], sizes = [8, 64], strides = [1, 1]} : vector<8x96xf32> to vector<8x64xf32>
    %84 = arith.addf %83, %82 : vector<8x64xf32>
    %85 = arith.negf %84 : vector<8x64xf32>
    %86 = math.exp %85 : vector<8x64xf32>
    %cst_36 = arith.constant 1.000000e+00 : f32
    %87 = vector.broadcast %cst_36 : f32 to vector<8x64xf32>
    %88 = arith.addf %87, %86 : vector<8x64xf32>
    %89 = arith.divf %87, %88 : vector<8x64xf32>
    %90 = vector.extract_strided_slice %89 {offsets = [0, 0], sizes = [8, 32], strides = [1, 1]} : vector<8x64xf32> to vector<8x32xf32>
    %91 = vector.extract_strided_slice %89 {offsets = [0, 32], sizes = [8, 32], strides = [1, 1]} : vector<8x64xf32> to vector<8x32xf32>
    %92 = vector.extract_strided_slice %76 {offsets = [0, 64], sizes = [8, 32], strides = [1, 1]} : vector<8x96xf32> to vector<8x32xf32>
    %93 = arith.mulf %91, %81 : vector<8x32xf32>
    %cst_37 = arith.constant dense<0.000000e+00> : vector<8x32xf32>
    %94 = tpu.matmul %93, %69, %cst_37 {dimension_numbers = #tpu.dot_dimension_numbers<[1], [0], [0], [1], [0, 0, 1, 1], [], []>} : vector<8x32xf32>, vector<32x32xf32>, vector<8x32xf32> -> vector<8x32xf32>
    %95 = arith.addf %92, %94 : vector<8x32xf32>
    %96 = math.tanh %95 : vector<8x32xf32>
    %cst_38 = arith.constant 1.000000e+00 : f32
    %97 = vector.broadcast %cst_38 : f32 to vector<8x32xf32>
    %98 = arith.subf %97, %90 : vector<8x32xf32>
    %99 = arith.mulf %98, %81 : vector<8x32xf32>
    %100 = arith.mulf %90, %96 : vector<8x32xf32>
    %101 = arith.addf %99, %100 : vector<8x32xf32>
    %cst_39 = arith.constant dense<0.000000e+00> : vector<8x96xf32>
    %102 = tpu.matmul %101, %70, %cst_39 {dimension_numbers = #tpu.dot_dimension_numbers<[1], [0], [0], [1], [0, 0, 1, 1], [], []>} : vector<8x32xf32>, vector<32x96xf32>, vector<8x96xf32> -> vector<8x96xf32>
    %103 = vector.broadcast %72 : vector<1x96xf32> to vector<8x96xf32>
    %104 = arith.addf %102, %103 : vector<8x96xf32>
    %105 = vector.extract_strided_slice %104 {offsets = [0, 0], sizes = [8, 64], strides = [1, 1]} : vector<8x96xf32> to vector<8x64xf32>
    %106 = vector.extract_strided_slice %79 {offsets = [0, 0], sizes = [8, 64], strides = [1, 1]} : vector<8x96xf32> to vector<8x64xf32>
    %107 = arith.addf %105, %106 : vector<8x64xf32>
    %108 = arith.negf %107 : vector<8x64xf32>
    %109 = math.exp %108 : vector<8x64xf32>
    %cst_40 = arith.constant 1.000000e+00 : f32
    %110 = vector.broadcast %cst_40 : f32 to vector<8x64xf32>
    %111 = arith.addf %110, %109 : vector<8x64xf32>
    %112 = arith.divf %110, %111 : vector<8x64xf32>
    %113 = vector.extract_strided_slice %112 {offsets = [0, 0], sizes = [8, 32], strides = [1, 1]} : vector<8x64xf32> to vector<8x32xf32>
    %114 = vector.extract_strided_slice %112 {offsets = [0, 32], sizes = [8, 32], strides = [1, 1]} : vector<8x64xf32> to vector<8x32xf32>
    %115 = vector.extract_strided_slice %104 {offsets = [0, 64], sizes = [8, 32], strides = [1, 1]} : vector<8x96xf32> to vector<8x32xf32>
    %116 = vector.extract_strided_slice %79 {offsets = [0, 64], sizes = [8, 32], strides = [1, 1]} : vector<8x96xf32> to vector<8x32xf32>
    %117 = arith.mulf %113, %116 : vector<8x32xf32>
    %118 = arith.addf %115, %117 : vector<8x32xf32>
    %119 = math.tanh %118 : vector<8x32xf32>
    %cst_41 = arith.constant 1.000000e+00 : f32
    %120 = vector.broadcast %cst_41 : f32 to vector<8x32xf32>
    %121 = arith.subf %120, %114 : vector<8x32xf32>
    %122 = arith.mulf %121, %119 : vector<8x32xf32>
    %123 = arith.mulf %114, %75 : vector<8x32xf32>
    %124 = arith.addf %122, %123 : vector<8x32xf32>
    %125 = vector.extract_strided_slice %67 {offsets = [8, 0], sizes = [8, 96], strides = [1, 1]} : vector<64x96xf32> to vector<8x96xf32>
    %cst_42 = arith.constant dense<0.000000e+00> : vector<8x96xf32>
    %126 = tpu.matmul %124, %71, %cst_42 {dimension_numbers = #tpu.dot_dimension_numbers<[1], [0], [0], [1], [0, 0, 1, 1], [], []>} : vector<8x32xf32>, vector<32x96xf32>, vector<8x96xf32> -> vector<8x96xf32>
    %127 = vector.broadcast %73 : vector<1x96xf32> to vector<8x96xf32>
    %128 = arith.addf %126, %127 : vector<8x96xf32>
    %129 = vector.extract_strided_slice %48 {offsets = [8, 0], sizes = [8, 32], strides = [1, 1]} : vector<64x32xf32> to vector<8x32xf32>
    %130 = arith.mulf %129, %101 : vector<8x32xf32>
    %cst_43 = arith.constant dense<0.000000e+00> : vector<8x64xf32>
    %131 = tpu.matmul %130, %68, %cst_43 {dimension_numbers = #tpu.dot_dimension_numbers<[1], [0], [0], [1], [0, 0, 1, 1], [], []>} : vector<8x32xf32>, vector<32x64xf32>, vector<8x64xf32> -> vector<8x64xf32>
    %132 = vector.extract_strided_slice %125 {offsets = [0, 0], sizes = [8, 64], strides = [1, 1]} : vector<8x96xf32> to vector<8x64xf32>
    %133 = arith.addf %132, %131 : vector<8x64xf32>
    %134 = arith.negf %133 : vector<8x64xf32>
    %135 = math.exp %134 : vector<8x64xf32>
    %cst_44 = arith.constant 1.000000e+00 : f32
    %136 = vector.broadcast %cst_44 : f32 to vector<8x64xf32>
    %137 = arith.addf %136, %135 : vector<8x64xf32>
    %138 = arith.divf %136, %137 : vector<8x64xf32>
    %139 = vector.extract_strided_slice %138 {offsets = [0, 0], sizes = [8, 32], strides = [1, 1]} : vector<8x64xf32> to vector<8x32xf32>
    %140 = vector.extract_strided_slice %138 {offsets = [0, 32], sizes = [8, 32], strides = [1, 1]} : vector<8x64xf32> to vector<8x32xf32>
    %141 = vector.extract_strided_slice %125 {offsets = [0, 64], sizes = [8, 32], strides = [1, 1]} : vector<8x96xf32> to vector<8x32xf32>
    %142 = arith.mulf %140, %130 : vector<8x32xf32>
    %cst_45 = arith.constant dense<0.000000e+00> : vector<8x32xf32>
    %143 = tpu.matmul %142, %69, %cst_45 {dimension_numbers = #tpu.dot_dimension_numbers<[1], [0], [0], [1], [0, 0, 1, 1], [], []>} : vector<8x32xf32>, vector<32x32xf32>, vector<8x32xf32> -> vector<8x32xf32>
    %144 = arith.addf %141, %143 : vector<8x32xf32>
    %145 = math.tanh %144 : vector<8x32xf32>
    %cst_46 = arith.constant 1.000000e+00 : f32
    %146 = vector.broadcast %cst_46 : f32 to vector<8x32xf32>
    %147 = arith.subf %146, %139 : vector<8x32xf32>
    %148 = arith.mulf %147, %130 : vector<8x32xf32>
    %149 = arith.mulf %139, %145 : vector<8x32xf32>
    %150 = arith.addf %148, %149 : vector<8x32xf32>
    %cst_47 = arith.constant dense<0.000000e+00> : vector<8x96xf32>
    %151 = tpu.matmul %150, %70, %cst_47 {dimension_numbers = #tpu.dot_dimension_numbers<[1], [0], [0], [1], [0, 0, 1, 1], [], []>} : vector<8x32xf32>, vector<32x96xf32>, vector<8x96xf32> -> vector<8x96xf32>
    %152 = vector.broadcast %72 : vector<1x96xf32> to vector<8x96xf32>
    %153 = arith.addf %151, %152 : vector<8x96xf32>
    %154 = vector.extract_strided_slice %153 {offsets = [0, 0], sizes = [8, 64], strides = [1, 1]} : vector<8x96xf32> to vector<8x64xf32>
    %155 = vector.extract_strided_slice %128 {offsets = [0, 0], sizes = [8, 64], strides = [1, 1]} : vector<8x96xf32> to vector<8x64xf32>
    %156 = arith.addf %154, %155 : vector<8x64xf32>
    %157 = arith.negf %156 : vector<8x64xf32>
    %158 = math.exp %157 : vector<8x64xf32>
    %cst_48 = arith.constant 1.000000e+00 : f32
    %159 = vector.broadcast %cst_48 : f32 to vector<8x64xf32>
    %160 = arith.addf %159, %158 : vector<8x64xf32>
    %161 = arith.divf %159, %160 : vector<8x64xf32>
    %162 = vector.extract_strided_slice %161 {offsets = [0, 0], sizes = [8, 32], strides = [1, 1]} : vector<8x64xf32> to vector<8x32xf32>
    %163 = vector.extract_strided_slice %161 {offsets = [0, 32], sizes = [8, 32], strides = [1, 1]} : vector<8x64xf32> to vector<8x32xf32>
    %164 = vector.extract_strided_slice %153 {offsets = [0, 64], sizes = [8, 32], strides = [1, 1]} : vector<8x96xf32> to vector<8x32xf32>
    %165 = vector.extract_strided_slice %128 {offsets = [0, 64], sizes = [8, 32], strides = [1, 1]} : vector<8x96xf32> to vector<8x32xf32>
    %166 = arith.mulf %162, %165 : vector<8x32xf32>
    %167 = arith.addf %164, %166 : vector<8x32xf32>
    %168 = math.tanh %167 : vector<8x32xf32>
    %cst_49 = arith.constant 1.000000e+00 : f32
    %169 = vector.broadcast %cst_49 : f32 to vector<8x32xf32>
    %170 = arith.subf %169, %163 : vector<8x32xf32>
    %171 = arith.mulf %170, %168 : vector<8x32xf32>
    %172 = arith.mulf %163, %124 : vector<8x32xf32>
    %173 = arith.addf %171, %172 : vector<8x32xf32>
    %174 = vector.extract_strided_slice %67 {offsets = [16, 0], sizes = [8, 96], strides = [1, 1]} : vector<64x96xf32> to vector<8x96xf32>
    %cst_50 = arith.constant dense<0.000000e+00> : vector<8x96xf32>
    %175 = tpu.matmul %173, %71, %cst_50 {dimension_numbers = #tpu.dot_dimension_numbers<[1], [0], [0], [1], [0, 0, 1, 1], [], []>} : vector<8x32xf32>, vector<32x96xf32>, vector<8x96xf32> -> vector<8x96xf32>
    %176 = vector.broadcast %73 : vector<1x96xf32> to vector<8x96xf32>
    %177 = arith.addf %175, %176 : vector<8x96xf32>
    %178 = vector.extract_strided_slice %48 {offsets = [16, 0], sizes = [8, 32], strides = [1, 1]} : vector<64x32xf32> to vector<8x32xf32>
    %179 = arith.mulf %178, %150 : vector<8x32xf32>
    %cst_51 = arith.constant dense<0.000000e+00> : vector<8x64xf32>
    %180 = tpu.matmul %179, %68, %cst_51 {dimension_numbers = #tpu.dot_dimension_numbers<[1], [0], [0], [1], [0, 0, 1, 1], [], []>} : vector<8x32xf32>, vector<32x64xf32>, vector<8x64xf32> -> vector<8x64xf32>
    %181 = vector.extract_strided_slice %174 {offsets = [0, 0], sizes = [8, 64], strides = [1, 1]} : vector<8x96xf32> to vector<8x64xf32>
    %182 = arith.addf %181, %180 : vector<8x64xf32>
    %183 = arith.negf %182 : vector<8x64xf32>
    %184 = math.exp %183 : vector<8x64xf32>
    %cst_52 = arith.constant 1.000000e+00 : f32
    %185 = vector.broadcast %cst_52 : f32 to vector<8x64xf32>
    %186 = arith.addf %185, %184 : vector<8x64xf32>
    %187 = arith.divf %185, %186 : vector<8x64xf32>
    %188 = vector.extract_strided_slice %187 {offsets = [0, 0], sizes = [8, 32], strides = [1, 1]} : vector<8x64xf32> to vector<8x32xf32>
    %189 = vector.extract_strided_slice %187 {offsets = [0, 32], sizes = [8, 32], strides = [1, 1]} : vector<8x64xf32> to vector<8x32xf32>
    %190 = vector.extract_strided_slice %174 {offsets = [0, 64], sizes = [8, 32], strides = [1, 1]} : vector<8x96xf32> to vector<8x32xf32>
    %191 = arith.mulf %189, %179 : vector<8x32xf32>
    %cst_53 = arith.constant dense<0.000000e+00> : vector<8x32xf32>
    %192 = tpu.matmul %191, %69, %cst_53 {dimension_numbers = #tpu.dot_dimension_numbers<[1], [0], [0], [1], [0, 0, 1, 1], [], []>} : vector<8x32xf32>, vector<32x32xf32>, vector<8x32xf32> -> vector<8x32xf32>
    %193 = arith.addf %190, %192 : vector<8x32xf32>
    %194 = math.tanh %193 : vector<8x32xf32>
    %cst_54 = arith.constant 1.000000e+00 : f32
    %195 = vector.broadcast %cst_54 : f32 to vector<8x32xf32>
    %196 = arith.subf %195, %188 : vector<8x32xf32>
    %197 = arith.mulf %196, %179 : vector<8x32xf32>
    %198 = arith.mulf %188, %194 : vector<8x32xf32>
    %199 = arith.addf %197, %198 : vector<8x32xf32>
    %cst_55 = arith.constant dense<0.000000e+00> : vector<8x96xf32>
    %200 = tpu.matmul %199, %70, %cst_55 {dimension_numbers = #tpu.dot_dimension_numbers<[1], [0], [0], [1], [0, 0, 1, 1], [], []>} : vector<8x32xf32>, vector<32x96xf32>, vector<8x96xf32> -> vector<8x96xf32>
    %201 = vector.broadcast %72 : vector<1x96xf32> to vector<8x96xf32>
    %202 = arith.addf %200, %201 : vector<8x96xf32>
    %203 = vector.extract_strided_slice %202 {offsets = [0, 0], sizes = [8, 64], strides = [1, 1]} : vector<8x96xf32> to vector<8x64xf32>
    %204 = vector.extract_strided_slice %177 {offsets = [0, 0], sizes = [8, 64], strides = [1, 1]} : vector<8x96xf32> to vector<8x64xf32>
    %205 = arith.addf %203, %204 : vector<8x64xf32>
    %206 = arith.negf %205 : vector<8x64xf32>
    %207 = math.exp %206 : vector<8x64xf32>
    %cst_56 = arith.constant 1.000000e+00 : f32
    %208 = vector.broadcast %cst_56 : f32 to vector<8x64xf32>
    %209 = arith.addf %208, %207 : vector<8x64xf32>
    %210 = arith.divf %208, %209 : vector<8x64xf32>
    %211 = vector.extract_strided_slice %210 {offsets = [0, 0], sizes = [8, 32], strides = [1, 1]} : vector<8x64xf32> to vector<8x32xf32>
    %212 = vector.extract_strided_slice %210 {offsets = [0, 32], sizes = [8, 32], strides = [1, 1]} : vector<8x64xf32> to vector<8x32xf32>
    %213 = vector.extract_strided_slice %202 {offsets = [0, 64], sizes = [8, 32], strides = [1, 1]} : vector<8x96xf32> to vector<8x32xf32>
    %214 = vector.extract_strided_slice %177 {offsets = [0, 64], sizes = [8, 32], strides = [1, 1]} : vector<8x96xf32> to vector<8x32xf32>
    %215 = arith.mulf %211, %214 : vector<8x32xf32>
    %216 = arith.addf %213, %215 : vector<8x32xf32>
    %217 = math.tanh %216 : vector<8x32xf32>
    %cst_57 = arith.constant 1.000000e+00 : f32
    %218 = vector.broadcast %cst_57 : f32 to vector<8x32xf32>
    %219 = arith.subf %218, %212 : vector<8x32xf32>
    %220 = arith.mulf %219, %217 : vector<8x32xf32>
    %221 = arith.mulf %212, %173 : vector<8x32xf32>
    %222 = arith.addf %220, %221 : vector<8x32xf32>
    %223 = vector.extract_strided_slice %67 {offsets = [24, 0], sizes = [8, 96], strides = [1, 1]} : vector<64x96xf32> to vector<8x96xf32>
    %cst_58 = arith.constant dense<0.000000e+00> : vector<8x96xf32>
    %224 = tpu.matmul %222, %71, %cst_58 {dimension_numbers = #tpu.dot_dimension_numbers<[1], [0], [0], [1], [0, 0, 1, 1], [], []>} : vector<8x32xf32>, vector<32x96xf32>, vector<8x96xf32> -> vector<8x96xf32>
    %225 = vector.broadcast %73 : vector<1x96xf32> to vector<8x96xf32>
    %226 = arith.addf %224, %225 : vector<8x96xf32>
    %227 = vector.extract_strided_slice %48 {offsets = [24, 0], sizes = [8, 32], strides = [1, 1]} : vector<64x32xf32> to vector<8x32xf32>
    %228 = arith.mulf %227, %199 : vector<8x32xf32>
    %cst_59 = arith.constant dense<0.000000e+00> : vector<8x64xf32>
    %229 = tpu.matmul %228, %68, %cst_59 {dimension_numbers = #tpu.dot_dimension_numbers<[1], [0], [0], [1], [0, 0, 1, 1], [], []>} : vector<8x32xf32>, vector<32x64xf32>, vector<8x64xf32> -> vector<8x64xf32>
    %230 = vector.extract_strided_slice %223 {offsets = [0, 0], sizes = [8, 64], strides = [1, 1]} : vector<8x96xf32> to vector<8x64xf32>
    %231 = arith.addf %230, %229 : vector<8x64xf32>
    %232 = arith.negf %231 : vector<8x64xf32>
    %233 = math.exp %232 : vector<8x64xf32>
    %cst_60 = arith.constant 1.000000e+00 : f32
    %234 = vector.broadcast %cst_60 : f32 to vector<8x64xf32>
    %235 = arith.addf %234, %233 : vector<8x64xf32>
    %236 = arith.divf %234, %235 : vector<8x64xf32>
    %237 = vector.extract_strided_slice %236 {offsets = [0, 0], sizes = [8, 32], strides = [1, 1]} : vector<8x64xf32> to vector<8x32xf32>
    %238 = vector.extract_strided_slice %236 {offsets = [0, 32], sizes = [8, 32], strides = [1, 1]} : vector<8x64xf32> to vector<8x32xf32>
    %239 = vector.extract_strided_slice %223 {offsets = [0, 64], sizes = [8, 32], strides = [1, 1]} : vector<8x96xf32> to vector<8x32xf32>
    %240 = arith.mulf %238, %228 : vector<8x32xf32>
    %cst_61 = arith.constant dense<0.000000e+00> : vector<8x32xf32>
    %241 = tpu.matmul %240, %69, %cst_61 {dimension_numbers = #tpu.dot_dimension_numbers<[1], [0], [0], [1], [0, 0, 1, 1], [], []>} : vector<8x32xf32>, vector<32x32xf32>, vector<8x32xf32> -> vector<8x32xf32>
    %242 = arith.addf %239, %241 : vector<8x32xf32>
    %243 = math.tanh %242 : vector<8x32xf32>
    %cst_62 = arith.constant 1.000000e+00 : f32
    %244 = vector.broadcast %cst_62 : f32 to vector<8x32xf32>
    %245 = arith.subf %244, %237 : vector<8x32xf32>
    %246 = arith.mulf %245, %228 : vector<8x32xf32>
    %247 = arith.mulf %237, %243 : vector<8x32xf32>
    %248 = arith.addf %246, %247 : vector<8x32xf32>
    %cst_63 = arith.constant dense<0.000000e+00> : vector<8x96xf32>
    %249 = tpu.matmul %248, %70, %cst_63 {dimension_numbers = #tpu.dot_dimension_numbers<[1], [0], [0], [1], [0, 0, 1, 1], [], []>} : vector<8x32xf32>, vector<32x96xf32>, vector<8x96xf32> -> vector<8x96xf32>
    %250 = vector.broadcast %72 : vector<1x96xf32> to vector<8x96xf32>
    %251 = arith.addf %249, %250 : vector<8x96xf32>
    %252 = vector.extract_strided_slice %251 {offsets = [0, 0], sizes = [8, 64], strides = [1, 1]} : vector<8x96xf32> to vector<8x64xf32>
    %253 = vector.extract_strided_slice %226 {offsets = [0, 0], sizes = [8, 64], strides = [1, 1]} : vector<8x96xf32> to vector<8x64xf32>
    %254 = arith.addf %252, %253 : vector<8x64xf32>
    %255 = arith.negf %254 : vector<8x64xf32>
    %256 = math.exp %255 : vector<8x64xf32>
    %cst_64 = arith.constant 1.000000e+00 : f32
    %257 = vector.broadcast %cst_64 : f32 to vector<8x64xf32>
    %258 = arith.addf %257, %256 : vector<8x64xf32>
    %259 = arith.divf %257, %258 : vector<8x64xf32>
    %260 = vector.extract_strided_slice %259 {offsets = [0, 0], sizes = [8, 32], strides = [1, 1]} : vector<8x64xf32> to vector<8x32xf32>
    %261 = vector.extract_strided_slice %259 {offsets = [0, 32], sizes = [8, 32], strides = [1, 1]} : vector<8x64xf32> to vector<8x32xf32>
    %262 = vector.extract_strided_slice %251 {offsets = [0, 64], sizes = [8, 32], strides = [1, 1]} : vector<8x96xf32> to vector<8x32xf32>
    %263 = vector.extract_strided_slice %226 {offsets = [0, 64], sizes = [8, 32], strides = [1, 1]} : vector<8x96xf32> to vector<8x32xf32>
    %264 = arith.mulf %260, %263 : vector<8x32xf32>
    %265 = arith.addf %262, %264 : vector<8x32xf32>
    %266 = math.tanh %265 : vector<8x32xf32>
    %cst_65 = arith.constant 1.000000e+00 : f32
    %267 = vector.broadcast %cst_65 : f32 to vector<8x32xf32>
    %268 = arith.subf %267, %261 : vector<8x32xf32>
    %269 = arith.mulf %268, %266 : vector<8x32xf32>
    %270 = arith.mulf %261, %222 : vector<8x32xf32>
    %271 = arith.addf %269, %270 : vector<8x32xf32>
    %272 = vector.extract_strided_slice %67 {offsets = [32, 0], sizes = [8, 96], strides = [1, 1]} : vector<64x96xf32> to vector<8x96xf32>
    %cst_66 = arith.constant dense<0.000000e+00> : vector<8x96xf32>
    %273 = tpu.matmul %271, %71, %cst_66 {dimension_numbers = #tpu.dot_dimension_numbers<[1], [0], [0], [1], [0, 0, 1, 1], [], []>} : vector<8x32xf32>, vector<32x96xf32>, vector<8x96xf32> -> vector<8x96xf32>
    %274 = vector.broadcast %73 : vector<1x96xf32> to vector<8x96xf32>
    %275 = arith.addf %273, %274 : vector<8x96xf32>
    %276 = vector.extract_strided_slice %48 {offsets = [32, 0], sizes = [8, 32], strides = [1, 1]} : vector<64x32xf32> to vector<8x32xf32>
    %277 = arith.mulf %276, %248 : vector<8x32xf32>
    %cst_67 = arith.constant dense<0.000000e+00> : vector<8x64xf32>
    %278 = tpu.matmul %277, %68, %cst_67 {dimension_numbers = #tpu.dot_dimension_numbers<[1], [0], [0], [1], [0, 0, 1, 1], [], []>} : vector<8x32xf32>, vector<32x64xf32>, vector<8x64xf32> -> vector<8x64xf32>
    %279 = vector.extract_strided_slice %272 {offsets = [0, 0], sizes = [8, 64], strides = [1, 1]} : vector<8x96xf32> to vector<8x64xf32>
    %280 = arith.addf %279, %278 : vector<8x64xf32>
    %281 = arith.negf %280 : vector<8x64xf32>
    %282 = math.exp %281 : vector<8x64xf32>
    %cst_68 = arith.constant 1.000000e+00 : f32
    %283 = vector.broadcast %cst_68 : f32 to vector<8x64xf32>
    %284 = arith.addf %283, %282 : vector<8x64xf32>
    %285 = arith.divf %283, %284 : vector<8x64xf32>
    %286 = vector.extract_strided_slice %285 {offsets = [0, 0], sizes = [8, 32], strides = [1, 1]} : vector<8x64xf32> to vector<8x32xf32>
    %287 = vector.extract_strided_slice %285 {offsets = [0, 32], sizes = [8, 32], strides = [1, 1]} : vector<8x64xf32> to vector<8x32xf32>
    %288 = vector.extract_strided_slice %272 {offsets = [0, 64], sizes = [8, 32], strides = [1, 1]} : vector<8x96xf32> to vector<8x32xf32>
    %289 = arith.mulf %287, %277 : vector<8x32xf32>
    %cst_69 = arith.constant dense<0.000000e+00> : vector<8x32xf32>
    %290 = tpu.matmul %289, %69, %cst_69 {dimension_numbers = #tpu.dot_dimension_numbers<[1], [0], [0], [1], [0, 0, 1, 1], [], []>} : vector<8x32xf32>, vector<32x32xf32>, vector<8x32xf32> -> vector<8x32xf32>
    %291 = arith.addf %288, %290 : vector<8x32xf32>
    %292 = math.tanh %291 : vector<8x32xf32>
    %cst_70 = arith.constant 1.000000e+00 : f32
    %293 = vector.broadcast %cst_70 : f32 to vector<8x32xf32>
    %294 = arith.subf %293, %286 : vector<8x32xf32>
    %295 = arith.mulf %294, %277 : vector<8x32xf32>
    %296 = arith.mulf %286, %292 : vector<8x32xf32>
    %297 = arith.addf %295, %296 : vector<8x32xf32>
    %cst_71 = arith.constant dense<0.000000e+00> : vector<8x96xf32>
    %298 = tpu.matmul %297, %70, %cst_71 {dimension_numbers = #tpu.dot_dimension_numbers<[1], [0], [0], [1], [0, 0, 1, 1], [], []>} : vector<8x32xf32>, vector<32x96xf32>, vector<8x96xf32> -> vector<8x96xf32>
    %299 = vector.broadcast %72 : vector<1x96xf32> to vector<8x96xf32>
    %300 = arith.addf %298, %299 : vector<8x96xf32>
    %301 = vector.extract_strided_slice %300 {offsets = [0, 0], sizes = [8, 64], strides = [1, 1]} : vector<8x96xf32> to vector<8x64xf32>
    %302 = vector.extract_strided_slice %275 {offsets = [0, 0], sizes = [8, 64], strides = [1, 1]} : vector<8x96xf32> to vector<8x64xf32>
    %303 = arith.addf %301, %302 : vector<8x64xf32>
    %304 = arith.negf %303 : vector<8x64xf32>
    %305 = math.exp %304 : vector<8x64xf32>
    %cst_72 = arith.constant 1.000000e+00 : f32
    %306 = vector.broadcast %cst_72 : f32 to vector<8x64xf32>
    %307 = arith.addf %306, %305 : vector<8x64xf32>
    %308 = arith.divf %306, %307 : vector<8x64xf32>
    %309 = vector.extract_strided_slice %308 {offsets = [0, 0], sizes = [8, 32], strides = [1, 1]} : vector<8x64xf32> to vector<8x32xf32>
    %310 = vector.extract_strided_slice %308 {offsets = [0, 32], sizes = [8, 32], strides = [1, 1]} : vector<8x64xf32> to vector<8x32xf32>
    %311 = vector.extract_strided_slice %300 {offsets = [0, 64], sizes = [8, 32], strides = [1, 1]} : vector<8x96xf32> to vector<8x32xf32>
    %312 = vector.extract_strided_slice %275 {offsets = [0, 64], sizes = [8, 32], strides = [1, 1]} : vector<8x96xf32> to vector<8x32xf32>
    %313 = arith.mulf %309, %312 : vector<8x32xf32>
    %314 = arith.addf %311, %313 : vector<8x32xf32>
    %315 = math.tanh %314 : vector<8x32xf32>
    %cst_73 = arith.constant 1.000000e+00 : f32
    %316 = vector.broadcast %cst_73 : f32 to vector<8x32xf32>
    %317 = arith.subf %316, %310 : vector<8x32xf32>
    %318 = arith.mulf %317, %315 : vector<8x32xf32>
    %319 = arith.mulf %310, %271 : vector<8x32xf32>
    %320 = arith.addf %318, %319 : vector<8x32xf32>
    %321 = vector.extract_strided_slice %67 {offsets = [40, 0], sizes = [8, 96], strides = [1, 1]} : vector<64x96xf32> to vector<8x96xf32>
    %cst_74 = arith.constant dense<0.000000e+00> : vector<8x96xf32>
    %322 = tpu.matmul %320, %71, %cst_74 {dimension_numbers = #tpu.dot_dimension_numbers<[1], [0], [0], [1], [0, 0, 1, 1], [], []>} : vector<8x32xf32>, vector<32x96xf32>, vector<8x96xf32> -> vector<8x96xf32>
    %323 = vector.broadcast %73 : vector<1x96xf32> to vector<8x96xf32>
    %324 = arith.addf %322, %323 : vector<8x96xf32>
    %325 = vector.extract_strided_slice %48 {offsets = [40, 0], sizes = [8, 32], strides = [1, 1]} : vector<64x32xf32> to vector<8x32xf32>
    %326 = arith.mulf %325, %297 : vector<8x32xf32>
    %cst_75 = arith.constant dense<0.000000e+00> : vector<8x64xf32>
    %327 = tpu.matmul %326, %68, %cst_75 {dimension_numbers = #tpu.dot_dimension_numbers<[1], [0], [0], [1], [0, 0, 1, 1], [], []>} : vector<8x32xf32>, vector<32x64xf32>, vector<8x64xf32> -> vector<8x64xf32>
    %328 = vector.extract_strided_slice %321 {offsets = [0, 0], sizes = [8, 64], strides = [1, 1]} : vector<8x96xf32> to vector<8x64xf32>
    %329 = arith.addf %328, %327 : vector<8x64xf32>
    %330 = arith.negf %329 : vector<8x64xf32>
    %331 = math.exp %330 : vector<8x64xf32>
    %cst_76 = arith.constant 1.000000e+00 : f32
    %332 = vector.broadcast %cst_76 : f32 to vector<8x64xf32>
    %333 = arith.addf %332, %331 : vector<8x64xf32>
    %334 = arith.divf %332, %333 : vector<8x64xf32>
    %335 = vector.extract_strided_slice %334 {offsets = [0, 0], sizes = [8, 32], strides = [1, 1]} : vector<8x64xf32> to vector<8x32xf32>
    %336 = vector.extract_strided_slice %334 {offsets = [0, 32], sizes = [8, 32], strides = [1, 1]} : vector<8x64xf32> to vector<8x32xf32>
    %337 = vector.extract_strided_slice %321 {offsets = [0, 64], sizes = [8, 32], strides = [1, 1]} : vector<8x96xf32> to vector<8x32xf32>
    %338 = arith.mulf %336, %326 : vector<8x32xf32>
    %cst_77 = arith.constant dense<0.000000e+00> : vector<8x32xf32>
    %339 = tpu.matmul %338, %69, %cst_77 {dimension_numbers = #tpu.dot_dimension_numbers<[1], [0], [0], [1], [0, 0, 1, 1], [], []>} : vector<8x32xf32>, vector<32x32xf32>, vector<8x32xf32> -> vector<8x32xf32>
    %340 = arith.addf %337, %339 : vector<8x32xf32>
    %341 = math.tanh %340 : vector<8x32xf32>
    %cst_78 = arith.constant 1.000000e+00 : f32
    %342 = vector.broadcast %cst_78 : f32 to vector<8x32xf32>
    %343 = arith.subf %342, %335 : vector<8x32xf32>
    %344 = arith.mulf %343, %326 : vector<8x32xf32>
    %345 = arith.mulf %335, %341 : vector<8x32xf32>
    %346 = arith.addf %344, %345 : vector<8x32xf32>
    %cst_79 = arith.constant dense<0.000000e+00> : vector<8x96xf32>
    %347 = tpu.matmul %346, %70, %cst_79 {dimension_numbers = #tpu.dot_dimension_numbers<[1], [0], [0], [1], [0, 0, 1, 1], [], []>} : vector<8x32xf32>, vector<32x96xf32>, vector<8x96xf32> -> vector<8x96xf32>
    %348 = vector.broadcast %72 : vector<1x96xf32> to vector<8x96xf32>
    %349 = arith.addf %347, %348 : vector<8x96xf32>
    %350 = vector.extract_strided_slice %349 {offsets = [0, 0], sizes = [8, 64], strides = [1, 1]} : vector<8x96xf32> to vector<8x64xf32>
    %351 = vector.extract_strided_slice %324 {offsets = [0, 0], sizes = [8, 64], strides = [1, 1]} : vector<8x96xf32> to vector<8x64xf32>
    %352 = arith.addf %350, %351 : vector<8x64xf32>
    %353 = arith.negf %352 : vector<8x64xf32>
    %354 = math.exp %353 : vector<8x64xf32>
    %cst_80 = arith.constant 1.000000e+00 : f32
    %355 = vector.broadcast %cst_80 : f32 to vector<8x64xf32>
    %356 = arith.addf %355, %354 : vector<8x64xf32>
    %357 = arith.divf %355, %356 : vector<8x64xf32>
    %358 = vector.extract_strided_slice %357 {offsets = [0, 0], sizes = [8, 32], strides = [1, 1]} : vector<8x64xf32> to vector<8x32xf32>
    %359 = vector.extract_strided_slice %357 {offsets = [0, 32], sizes = [8, 32], strides = [1, 1]} : vector<8x64xf32> to vector<8x32xf32>
    %360 = vector.extract_strided_slice %349 {offsets = [0, 64], sizes = [8, 32], strides = [1, 1]} : vector<8x96xf32> to vector<8x32xf32>
    %361 = vector.extract_strided_slice %324 {offsets = [0, 64], sizes = [8, 32], strides = [1, 1]} : vector<8x96xf32> to vector<8x32xf32>
    %362 = arith.mulf %358, %361 : vector<8x32xf32>
    %363 = arith.addf %360, %362 : vector<8x32xf32>
    %364 = math.tanh %363 : vector<8x32xf32>
    %cst_81 = arith.constant 1.000000e+00 : f32
    %365 = vector.broadcast %cst_81 : f32 to vector<8x32xf32>
    %366 = arith.subf %365, %359 : vector<8x32xf32>
    %367 = arith.mulf %366, %364 : vector<8x32xf32>
    %368 = arith.mulf %359, %320 : vector<8x32xf32>
    %369 = arith.addf %367, %368 : vector<8x32xf32>
    %370 = vector.extract_strided_slice %67 {offsets = [48, 0], sizes = [8, 96], strides = [1, 1]} : vector<64x96xf32> to vector<8x96xf32>
    %cst_82 = arith.constant dense<0.000000e+00> : vector<8x96xf32>
    %371 = tpu.matmul %369, %71, %cst_82 {dimension_numbers = #tpu.dot_dimension_numbers<[1], [0], [0], [1], [0, 0, 1, 1], [], []>} : vector<8x32xf32>, vector<32x96xf32>, vector<8x96xf32> -> vector<8x96xf32>
    %372 = vector.broadcast %73 : vector<1x96xf32> to vector<8x96xf32>
    %373 = arith.addf %371, %372 : vector<8x96xf32>
    %374 = vector.extract_strided_slice %48 {offsets = [48, 0], sizes = [8, 32], strides = [1, 1]} : vector<64x32xf32> to vector<8x32xf32>
    %375 = arith.mulf %374, %346 : vector<8x32xf32>
    %cst_83 = arith.constant dense<0.000000e+00> : vector<8x64xf32>
    %376 = tpu.matmul %375, %68, %cst_83 {dimension_numbers = #tpu.dot_dimension_numbers<[1], [0], [0], [1], [0, 0, 1, 1], [], []>} : vector<8x32xf32>, vector<32x64xf32>, vector<8x64xf32> -> vector<8x64xf32>
    %377 = vector.extract_strided_slice %370 {offsets = [0, 0], sizes = [8, 64], strides = [1, 1]} : vector<8x96xf32> to vector<8x64xf32>
    %378 = arith.addf %377, %376 : vector<8x64xf32>
    %379 = arith.negf %378 : vector<8x64xf32>
    %380 = math.exp %379 : vector<8x64xf32>
    %cst_84 = arith.constant 1.000000e+00 : f32
    %381 = vector.broadcast %cst_84 : f32 to vector<8x64xf32>
    %382 = arith.addf %381, %380 : vector<8x64xf32>
    %383 = arith.divf %381, %382 : vector<8x64xf32>
    %384 = vector.extract_strided_slice %383 {offsets = [0, 0], sizes = [8, 32], strides = [1, 1]} : vector<8x64xf32> to vector<8x32xf32>
    %385 = vector.extract_strided_slice %383 {offsets = [0, 32], sizes = [8, 32], strides = [1, 1]} : vector<8x64xf32> to vector<8x32xf32>
    %386 = vector.extract_strided_slice %370 {offsets = [0, 64], sizes = [8, 32], strides = [1, 1]} : vector<8x96xf32> to vector<8x32xf32>
    %387 = arith.mulf %385, %375 : vector<8x32xf32>
    %cst_85 = arith.constant dense<0.000000e+00> : vector<8x32xf32>
    %388 = tpu.matmul %387, %69, %cst_85 {dimension_numbers = #tpu.dot_dimension_numbers<[1], [0], [0], [1], [0, 0, 1, 1], [], []>} : vector<8x32xf32>, vector<32x32xf32>, vector<8x32xf32> -> vector<8x32xf32>
    %389 = arith.addf %386, %388 : vector<8x32xf32>
    %390 = math.tanh %389 : vector<8x32xf32>
    %cst_86 = arith.constant 1.000000e+00 : f32
    %391 = vector.broadcast %cst_86 : f32 to vector<8x32xf32>
    %392 = arith.subf %391, %384 : vector<8x32xf32>
    %393 = arith.mulf %392, %375 : vector<8x32xf32>
    %394 = arith.mulf %384, %390 : vector<8x32xf32>
    %395 = arith.addf %393, %394 : vector<8x32xf32>
    %cst_87 = arith.constant dense<0.000000e+00> : vector<8x96xf32>
    %396 = tpu.matmul %395, %70, %cst_87 {dimension_numbers = #tpu.dot_dimension_numbers<[1], [0], [0], [1], [0, 0, 1, 1], [], []>} : vector<8x32xf32>, vector<32x96xf32>, vector<8x96xf32> -> vector<8x96xf32>
    %397 = vector.broadcast %72 : vector<1x96xf32> to vector<8x96xf32>
    %398 = arith.addf %396, %397 : vector<8x96xf32>
    %399 = vector.extract_strided_slice %398 {offsets = [0, 0], sizes = [8, 64], strides = [1, 1]} : vector<8x96xf32> to vector<8x64xf32>
    %400 = vector.extract_strided_slice %373 {offsets = [0, 0], sizes = [8, 64], strides = [1, 1]} : vector<8x96xf32> to vector<8x64xf32>
    %401 = arith.addf %399, %400 : vector<8x64xf32>
    %402 = arith.negf %401 : vector<8x64xf32>
    %403 = math.exp %402 : vector<8x64xf32>
    %cst_88 = arith.constant 1.000000e+00 : f32
    %404 = vector.broadcast %cst_88 : f32 to vector<8x64xf32>
    %405 = arith.addf %404, %403 : vector<8x64xf32>
    %406 = arith.divf %404, %405 : vector<8x64xf32>
    %407 = vector.extract_strided_slice %406 {offsets = [0, 0], sizes = [8, 32], strides = [1, 1]} : vector<8x64xf32> to vector<8x32xf32>
    %408 = vector.extract_strided_slice %406 {offsets = [0, 32], sizes = [8, 32], strides = [1, 1]} : vector<8x64xf32> to vector<8x32xf32>
    %409 = vector.extract_strided_slice %398 {offsets = [0, 64], sizes = [8, 32], strides = [1, 1]} : vector<8x96xf32> to vector<8x32xf32>
    %410 = vector.extract_strided_slice %373 {offsets = [0, 64], sizes = [8, 32], strides = [1, 1]} : vector<8x96xf32> to vector<8x32xf32>
    %411 = arith.mulf %407, %410 : vector<8x32xf32>
    %412 = arith.addf %409, %411 : vector<8x32xf32>
    %413 = math.tanh %412 : vector<8x32xf32>
    %cst_89 = arith.constant 1.000000e+00 : f32
    %414 = vector.broadcast %cst_89 : f32 to vector<8x32xf32>
    %415 = arith.subf %414, %408 : vector<8x32xf32>
    %416 = arith.mulf %415, %413 : vector<8x32xf32>
    %417 = arith.mulf %408, %369 : vector<8x32xf32>
    %418 = arith.addf %416, %417 : vector<8x32xf32>
    %419 = vector.extract_strided_slice %67 {offsets = [56, 0], sizes = [8, 96], strides = [1, 1]} : vector<64x96xf32> to vector<8x96xf32>
    %cst_90 = arith.constant dense<0.000000e+00> : vector<8x96xf32>
    %420 = tpu.matmul %418, %71, %cst_90 {dimension_numbers = #tpu.dot_dimension_numbers<[1], [0], [0], [1], [0, 0, 1, 1], [], []>} : vector<8x32xf32>, vector<32x96xf32>, vector<8x96xf32> -> vector<8x96xf32>
    %421 = vector.broadcast %73 : vector<1x96xf32> to vector<8x96xf32>
    %422 = arith.addf %420, %421 : vector<8x96xf32>
    %423 = vector.extract_strided_slice %48 {offsets = [56, 0], sizes = [8, 32], strides = [1, 1]} : vector<64x32xf32> to vector<8x32xf32>
    %424 = arith.mulf %423, %395 : vector<8x32xf32>
    %cst_91 = arith.constant dense<0.000000e+00> : vector<8x64xf32>
    %425 = tpu.matmul %424, %68, %cst_91 {dimension_numbers = #tpu.dot_dimension_numbers<[1], [0], [0], [1], [0, 0, 1, 1], [], []>} : vector<8x32xf32>, vector<32x64xf32>, vector<8x64xf32> -> vector<8x64xf32>
    %426 = vector.extract_strided_slice %419 {offsets = [0, 0], sizes = [8, 64], strides = [1, 1]} : vector<8x96xf32> to vector<8x64xf32>
    %427 = arith.addf %426, %425 : vector<8x64xf32>
    %428 = arith.negf %427 : vector<8x64xf32>
    %429 = math.exp %428 : vector<8x64xf32>
    %cst_92 = arith.constant 1.000000e+00 : f32
    %430 = vector.broadcast %cst_92 : f32 to vector<8x64xf32>
    %431 = arith.addf %430, %429 : vector<8x64xf32>
    %432 = arith.divf %430, %431 : vector<8x64xf32>
    %433 = vector.extract_strided_slice %432 {offsets = [0, 0], sizes = [8, 32], strides = [1, 1]} : vector<8x64xf32> to vector<8x32xf32>
    %434 = vector.extract_strided_slice %432 {offsets = [0, 32], sizes = [8, 32], strides = [1, 1]} : vector<8x64xf32> to vector<8x32xf32>
    %435 = vector.extract_strided_slice %419 {offsets = [0, 64], sizes = [8, 32], strides = [1, 1]} : vector<8x96xf32> to vector<8x32xf32>
    %436 = arith.mulf %434, %424 : vector<8x32xf32>
    %cst_93 = arith.constant dense<0.000000e+00> : vector<8x32xf32>
    %437 = tpu.matmul %436, %69, %cst_93 {dimension_numbers = #tpu.dot_dimension_numbers<[1], [0], [0], [1], [0, 0, 1, 1], [], []>} : vector<8x32xf32>, vector<32x32xf32>, vector<8x32xf32> -> vector<8x32xf32>
    %438 = arith.addf %435, %437 : vector<8x32xf32>
    %439 = math.tanh %438 : vector<8x32xf32>
    %cst_94 = arith.constant 1.000000e+00 : f32
    %440 = vector.broadcast %cst_94 : f32 to vector<8x32xf32>
    %441 = arith.subf %440, %433 : vector<8x32xf32>
    %442 = arith.mulf %441, %424 : vector<8x32xf32>
    %443 = arith.mulf %433, %439 : vector<8x32xf32>
    %444 = arith.addf %442, %443 : vector<8x32xf32>
    %cst_95 = arith.constant dense<0.000000e+00> : vector<8x96xf32>
    %445 = tpu.matmul %444, %70, %cst_95 {dimension_numbers = #tpu.dot_dimension_numbers<[1], [0], [0], [1], [0, 0, 1, 1], [], []>} : vector<8x32xf32>, vector<32x96xf32>, vector<8x96xf32> -> vector<8x96xf32>
    %446 = vector.broadcast %72 : vector<1x96xf32> to vector<8x96xf32>
    %447 = arith.addf %445, %446 : vector<8x96xf32>
    %448 = vector.extract_strided_slice %447 {offsets = [0, 0], sizes = [8, 64], strides = [1, 1]} : vector<8x96xf32> to vector<8x64xf32>
    %449 = vector.extract_strided_slice %422 {offsets = [0, 0], sizes = [8, 64], strides = [1, 1]} : vector<8x96xf32> to vector<8x64xf32>
    %450 = arith.addf %448, %449 : vector<8x64xf32>
    %451 = arith.negf %450 : vector<8x64xf32>
    %452 = math.exp %451 : vector<8x64xf32>
    %cst_96 = arith.constant 1.000000e+00 : f32
    %453 = vector.broadcast %cst_96 : f32 to vector<8x64xf32>
    %454 = arith.addf %453, %452 : vector<8x64xf32>
    %455 = arith.divf %453, %454 : vector<8x64xf32>
    %456 = vector.extract_strided_slice %455 {offsets = [0, 0], sizes = [8, 32], strides = [1, 1]} : vector<8x64xf32> to vector<8x32xf32>
    %457 = vector.extract_strided_slice %455 {offsets = [0, 32], sizes = [8, 32], strides = [1, 1]} : vector<8x64xf32> to vector<8x32xf32>
    %458 = vector.extract_strided_slice %447 {offsets = [0, 64], sizes = [8, 32], strides = [1, 1]} : vector<8x96xf32> to vector<8x32xf32>
    %459 = vector.extract_strided_slice %422 {offsets = [0, 64], sizes = [8, 32], strides = [1, 1]} : vector<8x96xf32> to vector<8x32xf32>
    %460 = arith.mulf %456, %459 : vector<8x32xf32>
    %461 = arith.addf %458, %460 : vector<8x32xf32>
    %462 = math.tanh %461 : vector<8x32xf32>
    %cst_97 = arith.constant 1.000000e+00 : f32
    %463 = vector.broadcast %cst_97 : f32 to vector<8x32xf32>
    %464 = arith.subf %463, %457 : vector<8x32xf32>
    %465 = arith.mulf %464, %462 : vector<8x32xf32>
    %466 = arith.mulf %457, %418 : vector<8x32xf32>
    %467 = arith.addf %465, %466 : vector<8x32xf32>
    %c240 = arith.constant 240 : index
    %c0_98 = arith.constant 0 : index
    %468 = vector.load %arg1[%c240, %c0_98] : memref<336x128xf32, #tpu.memory_space<vmem>>, vector<16x32xf32>
    %cst_99 = arith.constant dense<0.000000e+00> : vector<8x32xf32>
    %469 = tpu.matmul %20, %468, %cst_99 {dimension_numbers = #tpu.dot_dimension_numbers<[1], [0], [0], [1], [0, 0, 1, 1], [], []>} : vector<8x16xf32>, vector<16x32xf32>, vector<8x32xf32> -> vector<8x32xf32>
    %c256 = arith.constant 256 : index
    %c0_100 = arith.constant 0 : index
    %470 = vector.load %arg1[%c256, %c0_100] : memref<336x128xf32, #tpu.memory_space<vmem>>, vector<32x32xf32>
    %cst_101 = arith.constant dense<0.000000e+00> : vector<8x32xf32>
    %471 = tpu.matmul %467, %470, %cst_101 {dimension_numbers = #tpu.dot_dimension_numbers<[1], [0], [0], [1], [0, 0, 1, 1], [], []>} : vector<8x32xf32>, vector<32x32xf32>, vector<8x32xf32> -> vector<8x32xf32>
    %472 = arith.addf %469, %471 : vector<8x32xf32>
    %473 = vector.extract_strided_slice %0 {offsets = [7, 0], sizes = [1, 32], strides = [1, 1]} : vector<16x128xf32> to vector<1x32xf32>
    %474 = vector.broadcast %473 : vector<1x32xf32> to vector<8x32xf32>
    %475 = arith.addf %472, %474 : vector<8x32xf32>
    %cst_102 = arith.constant 0.000000e+00 : f32
    %476 = vector.broadcast %cst_102 : f32 to vector<8x32xf32>
    %477 = arith.maximumf %475, %476 : vector<8x32xf32>
    %c288 = arith.constant 288 : index
    %c0_103 = arith.constant 0 : index
    %478 = vector.load %arg1[%c288, %c0_103] : memref<336x128xf32, #tpu.memory_space<vmem>>, vector<32x5xf32>
    %cst_104 = arith.constant dense<0.000000e+00> : vector<8x5xf32>
    %479 = tpu.matmul %477, %478, %cst_104 {dimension_numbers = #tpu.dot_dimension_numbers<[1], [0], [0], [1], [0, 0, 1, 1], [], []>} : vector<8x32xf32>, vector<32x5xf32>, vector<8x5xf32> -> vector<8x5xf32>
    %480 = vector.extract_strided_slice %0 {offsets = [8, 0], sizes = [1, 5], strides = [1, 1]} : vector<16x128xf32> to vector<1x5xf32>
    %481 = vector.broadcast %480 : vector<1x5xf32> to vector<8x5xf32>
    %482 = arith.addf %479, %481 : vector<8x5xf32>
    %c0_105 = arith.constant 0 : index
    %c0_106 = arith.constant 0 : index
    %483 = vector.load %arg2[%c0_105, %c0_106] : memref<8x5xf32, #tpu.memory_space<vmem>>, vector<8x5xf32>
    tpu.vector_store %arg2[%c0_105, %c0_106], %482 {strides = array<i32>} : memref<8x5xf32, #tpu.memory_space<vmem>>, vector<8x5xf32>,
    return
  }
}

</mosaic_0001>

<llo_original>
// kernel: forward.1
$region0: #{forward.1}
  #allocation0 [shape = 'u32[]', space=smem, size = 0x4, offset = 0x4, fixed_abs, tag = 'smem constant byte address 0x4 - core index']
  #allocation1 [shape = 'u32[72,128]{1,0:T(1,128)}', space=vmem, size = 0x9000, scoped, tag = 'internal scratch']
  %s0 = inlined_call_operand.vmem [shape: f32[80,48], index: 0, kind: input, shape index: {}]
  %s1 = inlined_call_operand.vmem [shape: f32[336,128], index: 1, kind: input, shape index: {}]
  %s2 = inlined_call_operand.vmem [shape: f32[8,5], index: 2, kind: output, shape index: {}]
  %s3 = sld [smem:[#allocation0]]
  $region18: #{forward.1} parent=0
    _
  %s5 = ssub.s32 1, %s3
  %s6 = scalar_select 0, %s5, %s3
  // Predicated region
  $region2: #{forward.1} parent=0 // pred_check
    _
  $region3: #{forward.1} parent=0 // pred_check_branch
    %8 = sbr.rel (0) target = $region5
  $region4: #{forward.1} parent=0 // pred_region
    _
  $region5: #{forward.1} parent=0 // pred_fallthru
    _
  // Predicated region
  $region6: #{forward.1} parent=0 // pred_check
    _
  $region7: #{forward.1} parent=0 // pred_check_branch
    %10 = sbr.rel (0) target = $region9
  $region8: #{forward.1} parent=0 // pred_region
    _
  $region9: #{forward.1} parent=0 // pred_fallthru
    _
  %v11 = vld [vmem:[%s1 + $0x140] sm:$0xff]
  %v12 = vld [vmem:[%s1 + $0x148] sm:$0xff]
  %v13 = vld [vmem:[%s0] sm:$0xff]
  %v14 = vld [vmem:[%s0 + $0x8] sm:$0xff]
  %v15 = vld [vmem:[%s0 + $0x10] sm:$0xff]
  %v16 = vld [vmem:[%s0 + $0x18] sm:$0xff]
  %v17 = vld [vmem:[%s0 + $0x20] sm:$0xff]
  %v18 = vld [vmem:[%s0 + $0x28] sm:$0xff]
  %v19 = vld [vmem:[%s0 + $0x30] sm:$0xff]
  %v20 = vld [vmem:[%s0 + $0x38] sm:$0xff]
  %v21 = vld [vmem:[%s0 + $0x40] sm:$0xff]
  %v22 = vld [vmem:[%s0 + $0x48] sm:$0x1]
  %v23 = vld [vmem:[%s1] sm:$0xff]
  %v24 = vld [vmem:[%s1 + $0x8] sm:$0xff]
  %v25 = vperm.slane %v11, 0
  %vm26 = vcmask 130048
  %v28 = vsel %vm26, %v21, 0
  %30 = vmatpush.msra.mxu0 0.0
  %31 = vmatpush.msra.mxu0 0.0
  %32 = vmatpush.msra.mxu0 0.0
  %33 = vmatpush.msra.mxu0 0.0
  %34 = vmatpush.msra.mxu0 0.0
  %35 = vmatpush.msra.mxu0 0.0
  %36 = vmatpush.msra.mxu0 0.0
  %37 = vmatpush.msra.mxu0 0.0
  %38 = vmatpush.msra.mxu0 0.0
  %39 = vmatpush.msra.mxu0 0.0
  %40 = vmatpush.msra.mxu0 0.0
  %41 = vmatpush.msra.mxu0 0.0
  %42 = vmatpush.msra.mxu0 0.0
  %43 = vmatpush.msra.mxu0 0.0
  %44 = vmatpush.msra.mxu0 %v24
  %45 = vmatpush.msra.mxu0 %v23
  %46 = vmatmul.f32.gmra.mxu0 %v28
  %v47 = vpop.f32.mrf.mxu0
  %v48 = vadd.f32 %v25, %v47
  %49 = vdwg.mxu0
  %v50 = vmax.f32 %v48, 0.0
  %v51 = vld [vmem:[%s1 + $0x10] sm:$0xff]
  %v52 = vld [vmem:[%s1 + $0x18] sm:$0xff]
  %v53 = vld [vmem:[%s1 + $0x20] sm:$0xff]
  %v54 = vld [vmem:[%s1 + $0x28] sm:$0xff]
  %v55 = vperm.slane %v11, 1
  %vm56 = vcmask 261120
  %v58 = vsel %vm56, %v50, 0
  %60 = vmatpush.msra.mxu0 0.0
  %61 = vmatpush.msra.mxu0 0.0
  %62 = vmatpush.msra.mxu0 0.0
  %63 = vmatpush.msra.mxu0 0.0
  %64 = vmatpush.msra.mxu0 0.0
  %65 = vmatpush.msra.mxu0 0.0
  %66 = vmatpush.msra.mxu0 0.0
  %67 = vmatpush.msra.mxu0 0.0
  %68 = vmatpush.msra.mxu0 0.0
  %69 = vmatpush.msra.mxu0 0.0
  %70 = vmatpush.msra.mxu0 0.0
  %71 = vmatpush.msra.mxu0 0.0
  %72 = vmatpush.msra.mxu0 %v54
  %73 = vmatpush.msra.mxu0 %v53
  %74 = vmatpush.msra.mxu0 %v52
  %75 = vmatpush.msra.mxu0 %v51
  %76 = vmatmul.f32.gmra.mxu0 %v58
  %v77 = vpop.f32.mrf.mxu0
  %v78 = vadd.f32 %v55, %v77
  %79 = vdwg.mxu0
  %v80 = vmax.f32 %v78, 0.0
  %v81 = vld [vmem:[%s1 + $0x30] sm:$0xff]
  %v82 = vld [vmem:[%s1 + $0x38] sm:$0xf]
  %v83 = vperm.slane %v11, 2
  %vm84 = vcmask 97280
  %v86 = vsel %vm84, %v13, 0
  %v89 = vsel %vm84, %v14, 0
  %v92 = vsel %vm84, %v15, 0
  %v95 = vsel %vm84, %v16, 0
  %v98 = vsel %vm84, %v17, 0
  %v101 = vsel %vm84, %v18, 0
  %v104 = vsel %vm84, %v19, 0
  %v107 = vsel %vm84, %v20, 0
  %vm109 = vcmask 1043456
  %v111 = vsel %vm109, %v82, 0
  %113 = vmatpush.msra.mxu0 0.0
  %114 = vmatpush.msra.mxu0 0.0
  %115 = vmatpush.msra.mxu0 0.0
  %116 = vmatpush.msra.mxu0 0.0
  %117 = vmatpush.msra.mxu0 0.0
  %118 = vmatpush.msra.mxu0 0.0
  %119 = vmatpush.msra.mxu0 0.0
  %120 = vmatpush.msra.mxu0 0.0
  %121 = vmatpush.msra.mxu0 0.0
  %122 = vmatpush.msra.mxu0 0.0
  %123 = vmatpush.msra.mxu0 0.0
  %124 = vmatpush.msra.mxu0 0.0
  %125 = vmatpush.msra.mxu0 0.0
  %126 = vmatpush.msra.mxu0 0.0
  %127 = vmatpush.msra.mxu0 %v111
  %128 = vmatpush.msra.mxu0 %v81
  %129 = vmatmul.f32.gmra.mxu0 %v86
  %v130 = vpop.f32.mrf.mxu0
  %v131 = vadd.f32 %v83, %v130
  %132 = vmatmul.f32.gmra.mxu0 %v89
  %v133 = vpop.f32.mrf.mxu0
  %v134 = vadd.f32 %v83, %v133
  %135 = vmatmul.f32.gmra.mxu0 %v92
  %v136 = vpop.f32.mrf.mxu0
  %v137 = vadd.f32 %v83, %v136
  %138 = vmatmul.f32.gmra.mxu0 %v95
  %v139 = vpop.f32.mrf.mxu0
  %v140 = vadd.f32 %v83, %v139
  %141 = vmatmul.f32.gmra.mxu0 %v98
  %v142 = vpop.f32.mrf.mxu0
  %v143 = vadd.f32 %v83, %v142
  %144 = vmatmul.f32.gmra.mxu0 %v101
  %v145 = vpop.f32.mrf.mxu0
  %v146 = vadd.f32 %v83, %v145
  %147 = vmatmul.f32.gmra.mxu0 %v104
  %v148 = vpop.f32.mrf.mxu0
  %v149 = vadd.f32 %v83, %v148
  %150 = vmatmul.f32.gmra.mxu0 %v107
  %v151 = vpop.f32.mrf.mxu0
  %v152 = vadd.f32 %v83, %v151
  %153 = vdwg.mxu0
  %v154 = vsel %vm84, %v131, -inf
  %155 = vmax.xlane.f32.xlu0 %v154
  %v156 = vpop.xlane.xlu0 %155
  %v157 = vsel %vm84, %v134, -inf
  %158 = vmax.xlane.f32.xlu0 %v157
  %v159 = vpop.xlane.xlu0 %158
  %v160 = vsel %vm84, %v137, -inf
  %161 = vmax.xlane.f32.xlu0 %v160
  %v162 = vpop.xlane.xlu0 %161
  %v163 = vsel %vm84, %v140, -inf
  %164 = vmax.xlane.f32.xlu0 %v163
  %v165 = vpop.xlane.xlu0 %164
  %v166 = vsel %vm84, %v143, -inf
  %167 = vmax.xlane.f32.xlu0 %v166
  %v168 = vpop.xlane.xlu0 %167
  %v169 = vsel %vm84, %v146, -inf
  %170 = vmax.xlane.f32.xlu0 %v169
  %v171 = vpop.xlane.xlu0 %170
  %v172 = vsel %vm84, %v149, -inf
  %173 = vmax.xlane.f32.xlu0 %v172
  %v174 = vpop.xlane.xlu0 %173
  %v175 = vsel %vm84, %v152, -inf
  %176 = vmax.xlane.f32.xlu0 %v175
  %v177 = vpop.xlane.xlu0 %176
  %v178 = vsub.f32 %v131, %v156
  %v179 = vsub.f32 %v134, %v159
  %v180 = vsub.f32 %v137, %v162
  %v181 = vsub.f32 %v140, %v165
  %v182 = vsub.f32 %v143, %v168
  %v183 = vsub.f32 %v146, %v171
  %v184 = vsub.f32 %v149, %v174
  %v185 = vsub.f32 %v152, %v177
  %v186 = vmul.f32 %v178, 1.442695
  %v187 = vpow.pop %v186
  %v188 = vmul.f32 %v179, 1.442695
  %v189 = vpow.pop %v188
  %v190 = vmul.f32 %v180, 1.442695
  %v191 = vpow.pop %v190
  %v192 = vmul.f32 %v181, 1.442695
  %v193 = vpow.pop %v192
  %v194 = vmul.f32 %v182, 1.442695
  %v195 = vpow.pop %v194
  %v196 = vmul.f32 %v183, 1.442695
  %v197 = vpow.pop %v196
  %v198 = vmul.f32 %v184, 1.442695
  %v199 = vpow.pop %v198
  %v200 = vmul.f32 %v185, 1.442695
  %v201 = vpow.pop %v200
  %v202 = vsel %vm84, %v187, 0.0
  %203 = vadd.xlane.f32.xlu0 %v202
  %v204 = vpop.xlane.xlu0 %203
  %v205 = vsel %vm84, %v189, 0.0
  %206 = vadd.xlane.f32.xlu0 %v205
  %v207 = vpop.xlane.xlu0 %206
  %v208 = vsel %vm84, %v191, 0.0
  %209 = vadd.xlane.f32.xlu0 %v208
  %v210 = vpop.xlane.xlu0 %209
  %v211 = vsel %vm84, %v193, 0.0
  %212 = vadd.xlane.f32.xlu0 %v211
  %v213 = vpop.xlane.xlu0 %212
  %v214 = vsel %vm84, %v195, 0.0
  %215 = vadd.xlane.f32.xlu0 %v214
  %v216 = vpop.xlane.xlu0 %215
  %v217 = vsel %vm84, %v197, 0.0
  %218 = vadd.xlane.f32.xlu0 %v217
  %v219 = vpop.xlane.xlu0 %218
  %v220 = vsel %vm84, %v199, 0.0
  %221 = vadd.xlane.f32.xlu0 %v220
  %v222 = vpop.xlane.xlu0 %221
  %v223 = vsel %vm84, %v201, 0.0
  %224 = vadd.xlane.f32.xlu0 %v223
  %v225 = vpop.xlane.xlu0 %224
  %v226 = vrcp.pop %v204
  %v227 = vrcp.pop %v207
  %v228 = vrcp.pop %v210
  %v229 = vrcp.pop %v213
  %v230 = vrcp.pop %v216
  %v231 = vrcp.pop %v219
  %v232 = vrcp.pop %v222
  %v233 = vrcp.pop %v225
  %v234 = vmul.f32 %v187, %v226
  %v235 = vmul.f32 %v189, %v227
  %v236 = vmul.f32 %v191, %v228
  %v237 = vmul.f32 %v193, %v229
  %v238 = vmul.f32 %v195, %v230
  %v239 = vmul.f32 %v197, %v231
  %v240 = vmul.f32 %v199, %v232
  %v241 = vmul.f32 %v201, %v233
  %v242 = vmul.f32 %v234, %v13
  %v243 = vmul.f32 %v235, %v14
  %v244 = vmul.f32 %v236, %v15
  %v245 = vmul.f32 %v237, %v16
  %v246 = vmul.f32 %v238, %v17
  %v247 = vmul.f32 %v239, %v18
  %v248 = vmul.f32 %v240, %v19
  %v249 = vmul.f32 %v241, %v20
  %v250 = vld [vmem:[%s1 + $0x40] sm:$0xff]
  %v251 = vld [vmem:[%s1 + $0x48] sm:$0xf]
  %v252 = vperm.slane %v11, 3
  %253 = vrot.lane.b32.xlu0 %v13, 104
  %v254 = vpop.permute.xlu0 %253
  %255 = vrot.lane.b32.xlu0 %v14, 104
  %v256 = vpop.permute.xlu0 %255
  %257 = vrot.lane.b32.xlu0 %v15, 104
  %v258 = vpop.permute.xlu0 %257
  %259 = vrot.lane.b32.xlu0 %v16, 104
  %v260 = vpop.permute.xlu0 %259
  %261 = vrot.lane.b32.xlu0 %v17, 104
  %v262 = vpop.permute.xlu0 %261
  %263 = vrot.lane.b32.xlu0 %v18, 104
  %v264 = vpop.permute.xlu0 %263
  %265 = vrot.lane.b32.xlu0 %v19, 104
  %v266 = vpop.permute.xlu0 %265
  %267 = vrot.lane.b32.xlu0 %v20, 104
  %v268 = vpop.permute.xlu0 %267
  %v269 = vsel %vm84, %v254, 0
  %v271 = vsel %vm84, %v256, 0
  %v273 = vsel %vm84, %v258, 0
  %v275 = vsel %vm84, %v260, 0
  %v277 = vsel %vm84, %v262, 0
  %v279 = vsel %vm84, %v264, 0
  %v281 = vsel %vm84, %v266, 0
  %v283 = vsel %vm84, %v268, 0
  %v286 = vsel %vm109, %v251, 0
  %288 = vmatpush.msra.mxu0 0.0
  %289 = vmatpush.msra.mxu0 0.0
  %290 = vmatpush.msra.mxu0 0.0
  %291 = vmatpush.msra.mxu0 0.0
  %292 = vmatpush.msra.mxu0 0.0
  %293 = vmatpush.msra.mxu0 0.0
  %294 = vmatpush.msra.mxu0 0.0
  %295 = vmatpush.msra.mxu0 0.0
  %296 = vmatpush.msra.mxu0 0.0
  %297 = vmatpush.msra.mxu0 0.0
  %298 = vmatpush.msra.mxu0 0.0
  %299 = vmatpush.msra.mxu0 0.0
  %300 = vmatpush.msra.mxu0 0.0
  %301 = vmatpush.msra.mxu0 0.0
  %302 = vmatpush.msra.mxu0 %v286
  %303 = vmatpush.msra.mxu0 %v250
  %304 = vmatmul.f32.gmra.mxu0 %v269
  %v305 = vpop.f32.mrf.mxu0
  %v306 = vadd.f32 %v252, %v305
  %307 = vmatmul.f32.gmra.mxu0 %v271
  %v308 = vpop.f32.mrf.mxu0
  %v309 = vadd.f32 %v252, %v308
  %310 = vmatmul.f32.gmra.mxu0 %v273
  %v311 = vpop.f32.mrf.mxu0
  %v312 = vadd.f32 %v252, %v311
  %313 = vmatmul.f32.gmra.mxu0 %v275
  %v314 = vpop.f32.mrf.mxu0
  %v315 = vadd.f32 %v252, %v314
  %316 = vmatmul.f32.gmra.mxu0 %v277
  %v317 = vpop.f32.mrf.mxu0
  %v318 = vadd.f32 %v252, %v317
  %319 = vmatmul.f32.gmra.mxu0 %v279
  %v320 = vpop.f32.mrf.mxu0
  %v321 = vadd.f32 %v252, %v320
  %322 = vmatmul.f32.gmra.mxu0 %v281
  %v323 = vpop.f32.mrf.mxu0
  %v324 = vadd.f32 %v252, %v323
  %325 = vmatmul.f32.gmra.mxu0 %v283
  %v326 = vpop.f32.mrf.mxu0
  %v327 = vadd.f32 %v252, %v326
  %328 = vdwg.mxu0
  %v329 = vmax.f32 %v306, 0.0
  %v330 = vmax.f32 %v309, 0.0
  %v331 = vmax.f32 %v312, 0.0
  %v332 = vmax.f32 %v315, 0.0
  %v333 = vmax.f32 %v318, 0.0
  %v334 = vmax.f32 %v321, 0.0
  %v335 = vmax.f32 %v324, 0.0
  %v336 = vmax.f32 %v327, 0.0
  %v337 = vsub.f32 0.0, %v329
  %v338 = vsub.f32 0.0, %v330
  %v339 = vsub.f32 0.0, %v331
  %v340 = vsub.f32 0.0, %v332
  %v341 = vsub.f32 0.0, %v333
  %v342 = vsub.f32 0.0, %v334
  %v343 = vsub.f32 0.0, %v335
  %v344 = vsub.f32 0.0, %v336
  %v345 = vmul.f32 %v337, 1.442695
  %v346 = vpow.pop %v345
  %v347 = vmul.f32 %v338, 1.442695
  %v348 = vpow.pop %v347
  %v349 = vmul.f32 %v339, 1.442695
  %v350 = vpow.pop %v349
  %v351 = vmul.f32 %v340, 1.442695
  %v352 = vpow.pop %v351
  %v353 = vmul.f32 %v341, 1.442695
  %v354 = vpow.pop %v353
  %v355 = vmul.f32 %v342, 1.442695
  %v356 = vpow.pop %v355
  %v357 = vmul.f32 %v343, 1.442695
  %v358 = vpow.pop %v357
  %v359 = vmul.f32 %v344, 1.442695
  %v360 = vpow.pop %v359
  %369 = vrot.lane.b32.xlu0 %v242, 12
  %v370 = vpop.permute.xlu0 %369
  %371 = vrot.lane.b32.xlu0 %v243, 12
  %v372 = vpop.permute.xlu0 %371
  %373 = vrot.lane.b32.xlu0 %v244, 12
  %v374 = vpop.permute.xlu0 %373
  %375 = vrot.lane.b32.xlu0 %v245, 12
  %v376 = vpop.permute.xlu0 %375
  %377 = vrot.lane.b32.xlu0 %v246, 12
  %v378 = vpop.permute.xlu0 %377
  %379 = vrot.lane.b32.xlu0 %v247, 12
  %v380 = vpop.permute.xlu0 %379
  %381 = vrot.lane.b32.xlu0 %v248, 12
  %v382 = vpop.permute.xlu0 %381
  %383 = vrot.lane.b32.xlu0 %v249, 12
  %v384 = vpop.permute.xlu0 %383
  %v393 = vmul.f32 %v13, %v370
  %v394 = vmul.f32 %v14, %v372
  %v395 = vmul.f32 %v15, %v374
  %v396 = vmul.f32 %v16, %v376
  %v397 = vmul.f32 %v17, %v378
  %v398 = vmul.f32 %v18, %v380
  %v399 = vmul.f32 %v19, %v382
  %v400 = vmul.f32 %v20, %v384
  %v401 = vsub.f32 1.0, %v13
  %v402 = vsub.f32 1.0, %v14
  %v403 = vsub.f32 1.0, %v15
  %v404 = vsub.f32 1.0, %v16
  %v405 = vsub.f32 1.0, %v17
  %v406 = vsub.f32 1.0, %v18
  %v407 = vsub.f32 1.0, %v19
  %v408 = vsub.f32 1.0, %v20
  %409 = vrot.lane.b32.xlu0 %v13, 92
  %v410 = vpop.permute.xlu0 %409
  %411 = vrot.lane.b32.xlu0 %v14, 92
  %v412 = vpop.permute.xlu0 %411
  %413 = vrot.lane.b32.xlu0 %v15, 92
  %v414 = vpop.permute.xlu0 %413
  %415 = vrot.lane.b32.xlu0 %v16, 92
  %v416 = vpop.permute.xlu0 %415
  %417 = vrot.lane.b32.xlu0 %v17, 92
  %v418 = vpop.permute.xlu0 %417
  %419 = vrot.lane.b32.xlu0 %v18, 92
  %v420 = vpop.permute.xlu0 %419
  %421 = vrot.lane.b32.xlu0 %v19, 92
  %v422 = vpop.permute.xlu0 %421
  %423 = vrot.lane.b32.xlu0 %v20, 92
  %v424 = vpop.permute.xlu0 %423
  %v433 = vmul.f32 %v346, %v410
  %v434 = vmul.f32 %v348, %v412
  %v435 = vmul.f32 %v350, %v414
  %v436 = vmul.f32 %v352, %v416
  %v437 = vmul.f32 %v354, %v418
  %v438 = vmul.f32 %v356, %v420
  %v439 = vmul.f32 %v358, %v422
  %v440 = vmul.f32 %v360, %v424
  %v441 = vsub.f32 1.0, %v346
  %v442 = vsub.f32 1.0, %v348
  %v443 = vsub.f32 1.0, %v350
  %v444 = vsub.f32 1.0, %v352
  %v445 = vsub.f32 1.0, %v354
  %v446 = vsub.f32 1.0, %v356
  %v447 = vsub.f32 1.0, %v358
  %v448 = vsub.f32 1.0, %v360
  %v449 = vperm.slane %v22, 0
  %v450 = vmul.f32 %v441, %v449
  %v451 = vmul.f32 %v442, %v449
  %v452 = vmul.f32 %v443, %v449
  %v453 = vmul.f32 %v444, %v449
  %v454 = vmul.f32 %v445, %v449
  %v455 = vmul.f32 %v446, %v449
  %v456 = vmul.f32 %v447, %v449
  %v457 = vmul.f32 %v448, %v449
  %v458 = vadd.f32 %v433, %v450
  %v459 = vadd.f32 %v434, %v451
  %v460 = vadd.f32 %v435, %v452
  %v461 = vadd.f32 %v436, %v453
  %v462 = vadd.f32 %v437, %v454
  %v463 = vadd.f32 %v438, %v455
  %v464 = vadd.f32 %v439, %v456
  %v465 = vadd.f32 %v440, %v457
  %474 = vrot.lane.b32.xlu0 %v458, 12
  %v475 = vpop.permute.xlu0 %474
  %476 = vrot.lane.b32.xlu0 %v459, 12
  %v477 = vpop.permute.xlu0 %476
  %478 = vrot.lane.b32.xlu0 %v460, 12
  %v479 = vpop.permute.xlu0 %478
  %480 = vrot.lane.b32.xlu0 %v461, 12
  %v481 = vpop.permute.xlu0 %480
  %482 = vrot.lane.b32.xlu0 %v462, 12
  %v483 = vpop.permute.xlu0 %482
  %484 = vrot.lane.b32.xlu0 %v463, 12
  %v485 = vpop.permute.xlu0 %484
  %486 = vrot.lane.b32.xlu0 %v464, 12
  %v487 = vpop.permute.xlu0 %486
  %488 = vrot.lane.b32.xlu0 %v465, 12
  %v489 = vpop.permute.xlu0 %488
  %v498 = vmul.f32 %v401, %v475
  %v499 = vmul.f32 %v402, %v477
  %v500 = vmul.f32 %v403, %v479
  %v501 = vmul.f32 %v404, %v481
  %v502 = vmul.f32 %v405, %v483
  %v503 = vmul.f32 %v406, %v485
  %v504 = vmul.f32 %v407, %v487
  %v505 = vmul.f32 %v408, %v489
  %v506 = vadd.f32 %v393, %v498
  %v507 = vadd.f32 %v394, %v499
  %v508 = vadd.f32 %v395, %v500
  %v509 = vadd.f32 %v396, %v501
  %v510 = vadd.f32 %v397, %v502
  %v511 = vadd.f32 %v398, %v503
  %v512 = vadd.f32 %v399, %v504
  %v513 = vadd.f32 %v400, %v505
  %v514 = vld [vmem:[%s1 + $0x50] sm:$0xff]
  %v515 = vld [vmem:[%s1 + $0x58] sm:$0xf]
  %v516 = vld [vmem:[%s1 + $0x60] sm:$0xff]
  %v517 = vld [vmem:[%s1 + $0x68] sm:$0xf]
  %518 = vrot.lane.b32.xlu0 %v13, 116
  %v519 = vpop.permute.xlu0 %518
  %520 = vrot.lane.b32.xlu0 %v14, 116
  %v521 = vpop.permute.xlu0 %520
  %522 = vrot.lane.b32.xlu0 %v15, 116
  %v523 = vpop.permute.xlu0 %522
  %524 = vrot.lane.b32.xlu0 %v16, 116
  %v525 = vpop.permute.xlu0 %524
  %526 = vrot.lane.b32.xlu0 %v17, 116
  %v527 = vpop.permute.xlu0 %526
  %528 = vrot.lane.b32.xlu0 %v18, 116
  %v529 = vpop.permute.xlu0 %528
  %530 = vrot.lane.b32.xlu0 %v19, 116
  %v531 = vpop.permute.xlu0 %530
  %532 = vrot.lane.b32.xlu0 %v20, 116
  %v533 = vpop.permute.xlu0 %532
  %v534 = vsel %vm84, %v519, 0
  %v536 = vsel %vm84, %v521, 0
  %v538 = vsel %vm84, %v523, 0
  %v540 = vsel %vm84, %v525, 0
  %v542 = vsel %vm84, %v527, 0
  %v544 = vsel %vm84, %v529, 0
  %v546 = vsel %vm84, %v531, 0
  %v548 = vsel %vm84, %v533, 0
  %v551 = vsel %vm109, %v517, 0
  %553 = vmatpush.msra.mxu0 0.0
  %554 = vmatpush.msra.mxu0 0.0
  %555 = vmatpush.msra.mxu0 0.0
  %556 = vmatpush.msra.mxu0 0.0
  %557 = vmatpush.msra.mxu0 0.0
  %558 = vmatpush.msra.mxu0 0.0
  %559 = vmatpush.msra.mxu0 0.0
  %560 = vmatpush.msra.mxu0 0.0
  %561 = vmatpush.msra.mxu0 0.0
  %562 = vmatpush.msra.mxu0 0.0
  %563 = vmatpush.msra.mxu0 0.0
  %564 = vmatpush.msra.mxu0 0.0
  %565 = vmatpush.msra.mxu0 0.0
  %566 = vmatpush.msra.mxu0 0.0
  %567 = vmatpush.msra.mxu0 %v551
  %568 = vmatpush.msra.mxu0 %v516
  %569 = vmatmul.f32.gmra.mxu0 %v534
  %v570 = vpop.f32.mrf.mxu0
  %v571 = vadd.f32 0.0, %v570
  %572 = vmatmul.f32.gmra.mxu0 %v536
  %v573 = vpop.f32.mrf.mxu0
  %v574 = vadd.f32 0.0, %v573
  %575 = vmatmul.f32.gmra.mxu0 %v538
  %v576 = vpop.f32.mrf.mxu0
  %v577 = vadd.f32 0.0, %v576
  %578 = vmatmul.f32.gmra.mxu0 %v540
  %v579 = vpop.f32.mrf.mxu0
  %v580 = vadd.f32 0.0, %v579
  %581 = vmatmul.f32.gmra.mxu0 %v542
  %v582 = vpop.f32.mrf.mxu0
  %v583 = vadd.f32 0.0, %v582
  %584 = vmatmul.f32.gmra.mxu0 %v544
  %v585 = vpop.f32.mrf.mxu0
  %v586 = vadd.f32 0.0, %v585
  %587 = vmatmul.f32.gmra.mxu0 %v546
  %v588 = vpop.f32.mrf.mxu0
  %v589 = vadd.f32 0.0, %v588
  %590 = vmatmul.f32.gmra.mxu0 %v548
  %v591 = vpop.f32.mrf.mxu0
  %v592 = vadd.f32 0.0, %v591
  %593 = vdwg.mxu0
  %602 = vrot.lane.b32.xlu0 %v506, 116
  %v603 = vpop.permute.xlu0 %602
  %604 = vrot.lane.b32.xlu0 %v507, 116
  %v605 = vpop.permute.xlu0 %604
  %606 = vrot.lane.b32.xlu0 %v508, 116
  %v607 = vpop.permute.xlu0 %606
  %608 = vrot.lane.b32.xlu0 %v509, 116
  %v609 = vpop.permute.xlu0 %608
  %610 = vrot.lane.b32.xlu0 %v510, 116
  %v611 = vpop.permute.xlu0 %610
  %612 = vrot.lane.b32.xlu0 %v511, 116
  %v613 = vpop.permute.xlu0 %612
  %614 = vrot.lane.b32.xlu0 %v512, 116
  %v615 = vpop.permute.xlu0 %614
  %616 = vrot.lane.b32.xlu0 %v513, 116
  %v617 = vpop.permute.xlu0 %616
  %v618 = vsel %vm84, %v603, 0
  %v620 = vsel %vm84, %v605, 0
  %v622 = vsel %vm84, %v607, 0
  %v624 = vsel %vm84, %v609, 0
  %v626 = vsel %vm84, %v611, 0
  %v628 = vsel %vm84, %v613, 0
  %v630 = vsel %vm84, %v615, 0
  %v632 = vsel %vm84, %v617, 0
  %v635 = vsel %vm109, %v515, 0
  %637 = vmatpush.msra.mxu0 0.0
  %638 = vmatpush.msra.mxu0 0.0
  %639 = vmatpush.msra.mxu0 0.0
  %640 = vmatpush.msra.mxu0 0.0
  %641 = vmatpush.msra.mxu0 0.0
  %642 = vmatpush.msra.mxu0 0.0
  %643 = vmatpush.msra.mxu0 0.0
  %644 = vmatpush.msra.mxu0 0.0
  %645 = vmatpush.msra.mxu0 0.0
  %646 = vmatpush.msra.mxu0 0.0
  %647 = vmatpush.msra.mxu0 0.0
  %648 = vmatpush.msra.mxu0 0.0
  %649 = vmatpush.msra.mxu0 0.0
  %650 = vmatpush.msra.mxu0 0.0
  %651 = vmatpush.msra.mxu0 %v635
  %652 = vmatpush.msra.mxu0 %v514
  %653 = vmatmul.f32.gmra.mxu0 %v618
  %v654 = vpop.f32.mrf.mxu0
  %v655 = vadd.f32 %v571, %v654
  %656 = vmatmul.f32.gmra.mxu0 %v620
  %v657 = vpop.f32.mrf.mxu0
  %v658 = vadd.f32 %v574, %v657
  %659 = vmatmul.f32.gmra.mxu0 %v622
  %v660 = vpop.f32.mrf.mxu0
  %v661 = vadd.f32 %v577, %v660
  %662 = vmatmul.f32.gmra.mxu0 %v624
  %v663 = vpop.f32.mrf.mxu0
  %v664 = vadd.f32 %v580, %v663
  %665 = vmatmul.f32.gmra.mxu0 %v626
  %v666 = vpop.f32.mrf.mxu0
  %v667 = vadd.f32 %v583, %v666
  %668 = vmatmul.f32.gmra.mxu0 %v628
  %v669 = vpop.f32.mrf.mxu0
  %v670 = vadd.f32 %v586, %v669
  %671 = vmatmul.f32.gmra.mxu0 %v630
  %v672 = vpop.f32.mrf.mxu0
  %v673 = vadd.f32 %v589, %v672
  %674 = vmatmul.f32.gmra.mxu0 %v632
  %v675 = vpop.f32.mrf.mxu0
  %v676 = vadd.f32 %v592, %v675
  %677 = vdwg.mxu0
  %v678 = vperm.slane %v11, 4
  %v679 = vadd.f32 %v655, %v678
  %v680 = vadd.f32 %v658, %v678
  %v681 = vadd.f32 %v661, %v678
  %v682 = vadd.f32 %v664, %v678
  %v683 = vadd.f32 %v667, %v678
  %v684 = vadd.f32 %v670, %v678
  %v685 = vadd.f32 %v673, %v678
  %v686 = vadd.f32 %v676, %v678
  %v687 = vld [vmem:[%s1 + $0x70] sm:$0xff]
  %v688 = vld [vmem:[%s1 + $0x78] sm:$0xff]
  %v689 = vld [vmem:[%s1 + $0x80] sm:$0xff]
  %v690 = vld [vmem:[%s1 + $0x88] sm:$0xff]
  %v691 = vld [vmem:[%s1 + $0x90] sm:$0xff]
  %v692 = vld [vmem:[%s1 + $0x98] sm:$0xff]
  %v693 = vld [vmem:[%s1 + $0xa0] sm:$0xff]
  %v694 = vld [vmem:[%s1 + $0xa8] sm:$0xff]
  %v695 = vld [vmem:[%s1 + $0xb0] sm:$0xff]
  %v696 = vld [vmem:[%s1 + $0xb8] sm:$0xff]
  %v697 = vld [vmem:[%s1 + $0xc0] sm:$0xff]
  %v698 = vld [vmem:[%s1 + $0xc8] sm:$0xff]
  %v699 = vld [vmem:[%s1 + $0xd0] sm:$0xff]
  %v700 = vld [vmem:[%s1 + $0xd8] sm:$0xff]
  %v701 = vld [vmem:[%s1 + $0xe0] sm:$0xff]
  %v702 = vld [vmem:[%s1 + $0xe8] sm:$0xff]
  %v703 = vperm.slane %v11, 6
  %v705 = vsel %vm56, 0.0, 0
  %707 = vmatpush.msra.mxu0 0.0
  %708 = vmatpush.msra.mxu0 0.0
  %709 = vmatpush.msra.mxu0 0.0
  %710 = vmatpush.msra.mxu0 0.0
  %711 = vmatpush.msra.mxu0 0.0
  %712 = vmatpush.msra.mxu0 0.0
  %713 = vmatpush.msra.mxu0 0.0
  %714 = vmatpush.msra.mxu0 0.0
  %715 = vmatpush.msra.mxu0 0.0
  %716 = vmatpush.msra.mxu0 0.0
  %717 = vmatpush.msra.mxu0 0.0
  %718 = vmatpush.msra.mxu0 0.0
  %719 = vmatpush.msra.mxu0 %v702
  %720 = vmatpush.msra.mxu0 %v701
  %721 = vmatpush.msra.mxu0 %v700
  %722 = vmatpush.msra.mxu0 %v699
  %723 = vmatmul.f32.gmra.mxu0 %v705
  %v724 = vpop.f32.mrf.mxu0
  %v725 = vadd.f32 %v703, %v724
  %726 = vdwg.mxu0
  %v727 = vmul.f32 %v346, 0.0
  %729 = vrot.lane.b32.xlu0 %v727, 116
  %v730 = vpop.permute.xlu0 %729
  %v731 = vsel %vm56, %v730, 0
  %733 = vmatpush.msra.mxu0 0.0
  %734 = vmatpush.msra.mxu0 0.0
  %735 = vmatpush.msra.mxu0 0.0
  %736 = vmatpush.msra.mxu0 0.0
  %737 = vmatpush.msra.mxu0 0.0
  %738 = vmatpush.msra.mxu0 0.0
  %739 = vmatpush.msra.mxu0 0.0
  %740 = vmatpush.msra.mxu0 0.0
  %741 = vmatpush.msra.mxu0 0.0
  %742 = vmatpush.msra.mxu0 0.0
  %743 = vmatpush.msra.mxu0 0.0
  %744 = vmatpush.msra.mxu0 0.0
  %745 = vmatpush.msra.mxu0 %v690
  %746 = vmatpush.msra.mxu0 %v689
  %747 = vmatpush.msra.mxu0 %v688
  %748 = vmatpush.msra.mxu0 %v687
  %749 = vmatmul.f32.gmra.mxu0 %v731
  %v750 = vpop.f32.mrf.mxu0
  %v751 = vadd.f32 0.0, %v750
  %752 = vdwg.mxu0
  %v753 = vadd.f32 %v679, %v751
  %v754 = vxor.u32 %v753, 2147483648
  %v755 = vmul.f32 %v754, 1.442695
  %v756 = vpow.pop %v755
  %v757 = vadd.f32 %v756, 1.0
  %v758 = vrcp.pop %v757
  %v759 = vmul.f32 %v757, %v758
  %v760 = vsub.f32 1.0, %v759
  %v761 = vmul.f32 %v758, %v760
  %v762 = vadd.f32 %v758, %v761
  %vm763 = vweird.f32 %v757
  %vm764 = vweird.f32 %v758
  %vm765 = vmor %vm763, %vm764
  %v766 = vsel %vm765, %v758, %v762
  %v767 = vand.u32 2147483647, %v757
  %vm768 = vcmp.eq.f32.partialorder %v767, 8.507059e+37
  %v769 = vand.u32 %v757, 2147483648
  %v770 = vor.u32 1.1754944e-38, %v769
  %v771 = vsel %vm768, %v770, %v766
  %v772 = vmul.f32 1.0, %v771
  %773 = vrot.lane.b32.xlu0 %v727, 20
  %v774 = vpop.permute.xlu0 %773
  %v776 = vmul.f32 %v772, %v774
  %778 = vrot.lane.b32.xlu0 %v776, 96
  %v779 = vpop.permute.xlu0 %778
  %v780 = vsel %vm56, %v779, 0
  %782 = vmatpush.msra.mxu0 0.0
  %783 = vmatpush.msra.mxu0 0.0
  %784 = vmatpush.msra.mxu0 0.0
  %785 = vmatpush.msra.mxu0 0.0
  %786 = vmatpush.msra.mxu0 0.0
  %787 = vmatpush.msra.mxu0 0.0
  %788 = vmatpush.msra.mxu0 0.0
  %789 = vmatpush.msra.mxu0 0.0
  %790 = vmatpush.msra.mxu0 0.0
  %791 = vmatpush.msra.mxu0 0.0
  %792 = vmatpush.msra.mxu0 0.0
  %793 = vmatpush.msra.mxu0 0.0
  %794 = vmatpush.msra.mxu0 %v694
  %795 = vmatpush.msra.mxu0 %v693
  %796 = vmatpush.msra.mxu0 %v692
  %797 = vmatpush.msra.mxu0 %v691
  %798 = vmatmul.f32.gmra.mxu0 %v780
  %v799 = vpop.f32.mrf.mxu0
  %v800 = vadd.f32 0.0, %v799
  %801 = vdwg.mxu0
  %803 = vrot.lane.b32.xlu0 %v800, 64
  %v804 = vpop.permute.xlu0 %803
  %v806 = vadd.f32 %v679, %v804
  %v807 = vtanh.pop %v806
  %v808 = vsub.f32 1.0, %v772
  %v810 = vmul.f32 %v808, %v730
  %812 = vrot.lane.b32.xlu0 %v807, 64
  %v813 = vpop.permute.xlu0 %812
  %v815 = vmul.f32 %v772, %v813
  %v816 = vadd.f32 %v810, %v815
  %v817 = vperm.slane %v11, 5
  %v819 = vsel %vm56, %v816, 0
  %821 = vmatpush.msra.mxu0 0.0
  %822 = vmatpush.msra.mxu0 0.0
  %823 = vmatpush.msra.mxu0 0.0
  %824 = vmatpush.msra.mxu0 0.0
  %825 = vmatpush.msra.mxu0 0.0
  %826 = vmatpush.msra.mxu0 0.0
  %827 = vmatpush.msra.mxu0 0.0
  %828 = vmatpush.msra.mxu0 0.0
  %829 = vmatpush.msra.mxu0 0.0
  %830 = vmatpush.msra.mxu0 0.0
  %831 = vmatpush.msra.mxu0 0.0
  %832 = vmatpush.msra.mxu0 0.0
  %833 = vmatpush.msra.mxu0 %v698
  %834 = vmatpush.msra.mxu0 %v697
  %835 = vmatpush.msra.mxu0 %v696
  %836 = vmatpush.msra.mxu0 %v695
  %837 = vmatmul.f32.gmra.mxu0 %v819
  %v838 = vpop.f32.mrf.mxu0
  %v839 = vadd.f32 %v817, %v838
  %840 = vdwg.mxu0
  %v841 = vadd.f32 %v839, %v725
  %v842 = vxor.u32 %v841, 2147483648
  %v843 = vmul.f32 %v842, 1.442695
  %v844 = vpow.pop %v843
  %v845 = vadd.f32 %v844, 1.0
  %v846 = vrcp.pop %v845
  %v847 = vmul.f32 %v845, %v846
  %v848 = vsub.f32 1.0, %v847
  %v849 = vmul.f32 %v846, %v848
  %v850 = vadd.f32 %v846, %v849
  %vm851 = vweird.f32 %v845
  %vm852 = vweird.f32 %v846
  %vm853 = vmor %vm851, %vm852
  %v854 = vsel %vm853, %v846, %v850
  %v855 = vand.u32 2147483647, %v845
  %vm856 = vcmp.eq.f32.partialorder %v855, 8.507059e+37
  %v857 = vand.u32 %v845, 2147483648
  %v858 = vor.u32 1.1754944e-38, %v857
  %v859 = vsel %vm856, %v858, %v854
  %v860 = vmul.f32 1.0, %v859
  %862 = vrot.lane.b32.xlu0 %v725, 64
  %v863 = vpop.permute.xlu0 %862
  %v865 = vmul.f32 %v860, %v863
  %867 = vrot.lane.b32.xlu0 %v865, 64
  %v868 = vpop.permute.xlu0 %867
  %v870 = vadd.f32 %v839, %v868
  %v871 = vtanh.pop %v870
  %v872 = vsub.f32 1.0, %v860
  %874 = vrot.lane.b32.xlu0 %v871, 96
  %v875 = vpop.permute.xlu0 %874
  %v877 = vmul.f32 %v872, %v875
  %v878 = vmul.f32 %v860, 0.0
  %v879 = vadd.f32 %v877, %v878
  %881 = vrot.lane.b32.xlu0 %v879, 96
  %v882 = vpop.permute.xlu0 %881
  %v883 = vsel %vm56, %v882, 0
  %885 = vmatpush.msra.mxu0 0.0
  %886 = vmatpush.msra.mxu0 0.0
  %887 = vmatpush.msra.mxu0 0.0
  %888 = vmatpush.msra.mxu0 0.0
  %889 = vmatpush.msra.mxu0 0.0
  %890 = vmatpush.msra.mxu0 0.0
  %891 = vmatpush.msra.mxu0 0.0
  %892 = vmatpush.msra.mxu0 0.0
  %893 = vmatpush.msra.mxu0 0.0
  %894 = vmatpush.msra.mxu0 0.0
  %895 = vmatpush.msra.mxu0 0.0
  %896 = vmatpush.msra.mxu0 0.0
  %897 = vmatpush.msra.mxu0 %v702
  %898 = vmatpush.msra.mxu0 %v701
  %899 = vmatpush.msra.mxu0 %v700
  %900 = vmatpush.msra.mxu0 %v699
  %901 = vmatmul.f32.gmra.mxu0 %v883
  %v902 = vpop.f32.mrf.mxu0
  %v903 = vadd.f32 %v703, %v902
  %904 = vdwg.mxu0
  %905 = vrot.lane.b32.xlu0 %v816, 12
  %v906 = vpop.permute.xlu0 %905
  %v908 = vmul.f32 %v348, %v906
  %910 = vrot.lane.b32.xlu0 %v908, 116
  %v911 = vpop.permute.xlu0 %910
  %v912 = vsel %vm56, %v911, 0
  %914 = vmatpush.msra.mxu0 0.0
  %915 = vmatpush.msra.mxu0 0.0
  %916 = vmatpush.msra.mxu0 0.0
  %917 = vmatpush.msra.mxu0 0.0
  %918 = vmatpush.msra.mxu0 0.0
  %919 = vmatpush.msra.mxu0 0.0
  %920 = vmatpush.msra.mxu0 0.0
  %921 = vmatpush.msra.mxu0 0.0
  %922 = vmatpush.msra.mxu0 0.0
  %923 = vmatpush.msra.mxu0 0.0
  %924 = vmatpush.msra.mxu0 0.0
  %925 = vmatpush.msra.mxu0 0.0
  %926 = vmatpush.msra.mxu0 %v690
  %927 = vmatpush.msra.mxu0 %v689
  %928 = vmatpush.msra.mxu0 %v688
  %929 = vmatpush.msra.mxu0 %v687
  %930 = vmatmul.f32.gmra.mxu0 %v912
  %v931 = vpop.f32.mrf.mxu0
  %v932 = vadd.f32 0.0, %v931
  %933 = vdwg.mxu0
  %v934 = vadd.f32 %v680, %v932
  %v935 = vxor.u32 %v934, 2147483648
  %v936 = vmul.f32 %v935, 1.442695
  %v937 = vpow.pop %v936
  %v938 = vadd.f32 %v937, 1.0
  %v939 = vrcp.pop %v938
  %v940 = vmul.f32 %v938, %v939
  %v941 = vsub.f32 1.0, %v940
  %v942 = vmul.f32 %v939, %v941
  %v943 = vadd.f32 %v939, %v942
  %vm944 = vweird.f32 %v938
  %vm945 = vweird.f32 %v939
  %vm946 = vmor %vm944, %vm945
  %v947 = vsel %vm946, %v939, %v943
  %v948 = vand.u32 2147483647, %v938
  %vm949 = vcmp.eq.f32.partialorder %v948, 8.507059e+37
  %v950 = vand.u32 %v938, 2147483648
  %v951 = vor.u32 1.1754944e-38, %v950
  %v952 = vsel %vm949, %v951, %v947
  %v953 = vmul.f32 1.0, %v952
  %954 = vrot.lane.b32.xlu0 %v908, 20
  %v955 = vpop.permute.xlu0 %954
  %v957 = vmul.f32 %v953, %v955
  %959 = vrot.lane.b32.xlu0 %v957, 96
  %v960 = vpop.permute.xlu0 %959
  %v961 = vsel %vm56, %v960, 0
  %963 = vmatpush.msra.mxu0 0.0
  %964 = vmatpush.msra.mxu0 0.0
  %965 = vmatpush.msra.mxu0 0.0
  %966 = vmatpush.msra.mxu0 0.0
  %967 = vmatpush.msra.mxu0 0.0
  %968 = vmatpush.msra.mxu0 0.0
  %969 = vmatpush.msra.mxu0 0.0
  %970 = vmatpush.msra.mxu0 0.0
  %971 = vmatpush.msra.mxu0 0.0
  %972 = vmatpush.msra.mxu0 0.0
  %973 = vmatpush.msra.mxu0 0.0
  %974 = vmatpush.msra.mxu0 0.0
  %975 = vmatpush.msra.mxu0 %v694
  %976 = vmatpush.msra.mxu0 %v693
  %977 = vmatpush.msra.mxu0 %v692
  %978 = vmatpush.msra.mxu0 %v691
  %979 = vmatmul.f32.gmra.mxu0 %v961
  %v980 = vpop.f32.mrf.mxu0
  %v981 = vadd.f32 0.0, %v980
  %982 = vdwg.mxu0
  %984 = vrot.lane.b32.xlu0 %v981, 64
  %v985 = vpop.permute.xlu0 %984
  %v987 = vadd.f32 %v680, %v985
  %v988 = vtanh.pop %v987
  %v989 = vsub.f32 1.0, %v953
  %v991 = vmul.f32 %v989, %v911
  %993 = vrot.lane.b32.xlu0 %v988, 64
  %v994 = vpop.permute.xlu0 %993
  %v996 = vmul.f32 %v953, %v994
  %v997 = vadd.f32 %v991, %v996
  %v999 = vsel %vm56, %v997, 0
  %1001 = vmatpush.msra.mxu0 0.0
  %1002 = vmatpush.msra.mxu0 0.0
  %1003 = vmatpush.msra.mxu0 0.0
  %1004 = vmatpush.msra.mxu0 0.0
  %1005 = vmatpush.msra.mxu0 0.0
  %1006 = vmatpush.msra.mxu0 0.0
  %1007 = vmatpush.msra.mxu0 0.0
  %1008 = vmatpush.msra.mxu0 0.0
  %1009 = vmatpush.msra.mxu0 0.0
  %1010 = vmatpush.msra.mxu0 0.0
  %1011 = vmatpush.msra.mxu0 0.0
  %1012 = vmatpush.msra.mxu0 0.0
  %1013 = vmatpush.msra.mxu0 %v698
  %1014 = vmatpush.msra.mxu0 %v697
  %1015 = vmatpush.msra.mxu0 %v696
  %1016 = vmatpush.msra.mxu0 %v695
  %1017 = vmatmul.f32.gmra.mxu0 %v999
  %v1018 = vpop.f32.mrf.mxu0
  %v1019 = vadd.f32 %v817, %v1018
  %1020 = vdwg.mxu0
  %v1021 = vadd.f32 %v1019, %v903
  %v1022 = vxor.u32 %v1021, 2147483648
  %v1023 = vmul.f32 %v1022, 1.442695
  %v1024 = vpow.pop %v1023
  %v1025 = vadd.f32 %v1024, 1.0
  %v1026 = vrcp.pop %v1025
  %v1027 = vmul.f32 %v1025, %v1026
  %v1028 = vsub.f32 1.0, %v1027
  %v1029 = vmul.f32 %v1026, %v1028
  %v1030 = vadd.f32 %v1026, %v1029
  %vm1031 = vweird.f32 %v1025
  %vm1032 = vweird.f32 %v1026
  %vm1033 = vmor %vm1031, %vm1032
  %v1034 = vsel %vm1033, %v1026, %v1030
  %v1035 = vand.u32 2147483647, %v1025
  %vm1036 = vcmp.eq.f32.partialorder %v1035, 8.507059e+37
  %v1037 = vand.u32 %v1025, 2147483648
  %v1038 = vor.u32 1.1754944e-38, %v1037
  %v1039 = vsel %vm1036, %v1038, %v1034
  %v1040 = vmul.f32 1.0, %v1039
  %1042 = vrot.lane.b32.xlu0 %v903, 64
  %v1043 = vpop.permute.xlu0 %1042
  %v1045 = vmul.f32 %v1040, %v1043
  %1047 = vrot.lane.b32.xlu0 %v1045, 64
  %v1048 = vpop.permute.xlu0 %1047
  %v1050 = vadd.f32 %v1019, %v1048
  %v1051 = vtanh.pop %v1050
  %v1052 = vsub.f32 1.0, %v1040
  %1054 = vrot.lane.b32.xlu0 %v1051, 96
  %v1055 = vpop.permute.xlu0 %1054
  %v1057 = vmul.f32 %v1052, %v1055
  %v1058 = vmul.f32 %v1040, %v879
  %v1059 = vadd.f32 %v1057, %v1058
  %1061 = vrot.lane.b32.xlu0 %v1059, 96
  %v1062 = vpop.permute.xlu0 %1061
  %v1063 = vsel %vm56, %v1062, 0
  %1065 = vmatpush.msra.mxu0 0.0
  %1066 = vmatpush.msra.mxu0 0.0
  %1067 = vmatpush.msra.mxu0 0.0
  %1068 = vmatpush.msra.mxu0 0.0
  %1069 = vmatpush.msra.mxu0 0.0
  %1070 = vmatpush.msra.mxu0 0.0
  %1071 = vmatpush.msra.mxu0 0.0
  %1072 = vmatpush.msra.mxu0 0.0
  %1073 = vmatpush.msra.mxu0 0.0
  %1074 = vmatpush.msra.mxu0 0.0
  %1075 = vmatpush.msra.mxu0 0.0
  %1076 = vmatpush.msra.mxu0 0.0
  %1077 = vmatpush.msra.mxu0 %v702
  %1078 = vmatpush.msra.mxu0 %v701
  %1079 = vmatpush.msra.mxu0 %v700
  %1080 = vmatpush.msra.mxu0 %v699
  %1081 = vmatmul.f32.gmra.mxu0 %v1063
  %v1082 = vpop.f32.mrf.mxu0
  %v1083 = vadd.f32 %v703, %v1082
  %1084 = vdwg.mxu0
  %1085 = vrot.lane.b32.xlu0 %v997, 12
  %v1086 = vpop.permute.xlu0 %1085
  %v1088 = vmul.f32 %v350, %v1086
  %1090 = vrot.lane.b32.xlu0 %v1088, 116
  %v1091 = vpop.permute.xlu0 %1090
  %v1092 = vsel %vm56, %v1091, 0
  %1094 = vmatpush.msra.mxu0 0.0
  %1095 = vmatpush.msra.mxu0 0.0
  %1096 = vmatpush.msra.mxu0 0.0
  %1097 = vmatpush.msra.mxu0 0.0
  %1098 = vmatpush.msra.mxu0 0.0
  %1099 = vmatpush.msra.mxu0 0.0
  %1100 = vmatpush.msra.mxu0 0.0
  %1101 = vmatpush.msra.mxu0 0.0
  %1102 = vmatpush.msra.mxu0 0.0
  %1103 = vmatpush.msra.mxu0 0.0
  %1104 = vmatpush.msra.mxu0 0.0
  %1105 = vmatpush.msra.mxu0 0.0
  %1106 = vmatpush.msra.mxu0 %v690
  %1107 = vmatpush.msra.mxu0 %v689
  %1108 = vmatpush.msra.mxu0 %v688
  %1109 = vmatpush.msra.mxu0 %v687
  %1110 = vmatmul.f32.gmra.mxu0 %v1092
  %v1111 = vpop.f32.mrf.mxu0
  %v1112 = vadd.f32 0.0, %v1111
  %1113 = vdwg.mxu0
  %v1114 = vadd.f32 %v681, %v1112
  %v1115 = vxor.u32 %v1114, 2147483648
  %v1116 = vmul.f32 %v1115, 1.442695
  %v1117 = vpow.pop %v1116
  %v1118 = vadd.f32 %v1117, 1.0
  %v1119 = vrcp.pop %v1118
  %v1120 = vmul.f32 %v1118, %v1119
  %v1121 = vsub.f32 1.0, %v1120
  %v1122 = vmul.f32 %v1119, %v1121
  %v1123 = vadd.f32 %v1119, %v1122
  %vm1124 = vweird.f32 %v1118
  %vm1125 = vweird.f32 %v1119
  %vm1126 = vmor %vm1124, %vm1125
  %v1127 = vsel %vm1126, %v1119, %v1123
  %v1128 = vand.u32 2147483647, %v1118
  %vm1129 = vcmp.eq.f32.partialorder %v1128, 8.507059e+37
  %v1130 = vand.u32 %v1118, 2147483648
  %v1131 = vor.u32 1.1754944e-38, %v1130
  %v1132 = vsel %vm1129, %v1131, %v1127
  %v1133 = vmul.f32 1.0, %v1132
  %1134 = vrot.lane.b32.xlu0 %v1088, 20
  %v1135 = vpop.permute.xlu0 %1134
  %v1137 = vmul.f32 %v1133, %v1135
  %1139 = vrot.lane.b32.xlu0 %v1137, 96
  %v1140 = vpop.permute.xlu0 %1139
  %v1141 = vsel %vm56, %v1140, 0
  %1143 = vmatpush.msra.mxu0 0.0
  %1144 = vmatpush.msra.mxu0 0.0
  %1145 = vmatpush.msra.mxu0 0.0
  %1146 = vmatpush.msra.mxu0 0.0
  %1147 = vmatpush.msra.mxu0 0.0
  %1148 = vmatpush.msra.mxu0 0.0
  %1149 = vmatpush.msra.mxu0 0.0
  %1150 = vmatpush.msra.mxu0 0.0
  %1151 = vmatpush.msra.mxu0 0.0
  %1152 = vmatpush.msra.mxu0 0.0
  %1153 = vmatpush.msra.mxu0 0.0
  %1154 = vmatpush.msra.mxu0 0.0
  %1155 = vmatpush.msra.mxu0 %v694
  %1156 = vmatpush.msra.mxu0 %v693
  %1157 = vmatpush.msra.mxu0 %v692
  %1158 = vmatpush.msra.mxu0 %v691
  %1159 = vmatmul.f32.gmra.mxu0 %v1141
  %v1160 = vpop.f32.mrf.mxu0
  %v1161 = vadd.f32 0.0, %v1160
  %1162 = vdwg.mxu0
  %1164 = vrot.lane.b32.xlu0 %v1161, 64
  %v1165 = vpop.permute.xlu0 %1164
  %v1167 = vadd.f32 %v681, %v1165
  %v1168 = vtanh.pop %v1167
  %v1169 = vsub.f32 1.0, %v1133
  %v1171 = vmul.f32 %v1169, %v1091
  %1173 = vrot.lane.b32.xlu0 %v1168, 64
  %v1174 = vpop.permute.xlu0 %1173
  %v1176 = vmul.f32 %v1133, %v1174
  %v1177 = vadd.f32 %v1171, %v1176
  %v1179 = vsel %vm56, %v1177, 0
  %1181 = vmatpush.msra.mxu0 0.0
  %1182 = vmatpush.msra.mxu0 0.0
  %1183 = vmatpush.msra.mxu0 0.0
  %1184 = vmatpush.msra.mxu0 0.0
  %1185 = vmatpush.msra.mxu0 0.0
  %1186 = vmatpush.msra.mxu0 0.0
  %1187 = vmatpush.msra.mxu0 0.0
  %1188 = vmatpush.msra.mxu0 0.0
  %1189 = vmatpush.msra.mxu0 0.0
  %1190 = vmatpush.msra.mxu0 0.0
  %1191 = vmatpush.msra.mxu0 0.0
  %1192 = vmatpush.msra.mxu0 0.0
  %1193 = vmatpush.msra.mxu0 %v698
  %1194 = vmatpush.msra.mxu0 %v697
  %1195 = vmatpush.msra.mxu0 %v696
  %1196 = vmatpush.msra.mxu0 %v695
  %1197 = vmatmul.f32.gmra.mxu0 %v1179
  %v1198 = vpop.f32.mrf.mxu0
  %v1199 = vadd.f32 %v817, %v1198
  %1200 = vdwg.mxu0
  %v1201 = vadd.f32 %v1199, %v1083
  %v1202 = vxor.u32 %v1201, 2147483648
  %v1203 = vmul.f32 %v1202, 1.442695
  %v1204 = vpow.pop %v1203
  %v1205 = vadd.f32 %v1204, 1.0
  %v1206 = vrcp.pop %v1205
  %v1207 = vmul.f32 %v1205, %v1206
  %v1208 = vsub.f32 1.0, %v1207
  %v1209 = vmul.f32 %v1206, %v1208
  %v1210 = vadd.f32 %v1206, %v1209
  %vm1211 = vweird.f32 %v1205
  %vm1212 = vweird.f32 %v1206
  %vm1213 = vmor %vm1211, %vm1212
  %v1214 = vsel %vm1213, %v1206, %v1210
  %v1215 = vand.u32 2147483647, %v1205
  %vm1216 = vcmp.eq.f32.partialorder %v1215, 8.507059e+37
  %v1217 = vand.u32 %v1205, 2147483648
  %v1218 = vor.u32 1.1754944e-38, %v1217
  %v1219 = vsel %vm1216, %v1218, %v1214
  %v1220 = vmul.f32 1.0, %v1219
  %1222 = vrot.lane.b32.xlu0 %v1083, 64
  %v1223 = vpop.permute.xlu0 %1222
  %v1225 = vmul.f32 %v1220, %v1223
  %1227 = vrot.lane.b32.xlu0 %v1225, 64
  %v1228 = vpop.permute.xlu0 %1227
  %v1230 = vadd.f32 %v1199, %v1228
  %v1231 = vtanh.pop %v1230
  %v1232 = vsub.f32 1.0, %v1220
  %1234 = vrot.lane.b32.xlu0 %v1231, 96
  %v1235 = vpop.permute.xlu0 %1234
  %v1237 = vmul.f32 %v1232, %v1235
  %v1238 = vmul.f32 %v1220, %v1059
  %v1239 = vadd.f32 %v1237, %v1238
  %1241 = vrot.lane.b32.xlu0 %v1239, 96
  %v1242 = vpop.permute.xlu0 %1241
  %v1243 = vsel %vm56, %v1242, 0
  %1245 = vmatpush.msra.mxu0 0.0
  %1246 = vmatpush.msra.mxu0 0.0
  %1247 = vmatpush.msra.mxu0 0.0
  %1248 = vmatpush.msra.mxu0 0.0
  %1249 = vmatpush.msra.mxu0 0.0
  %1250 = vmatpush.msra.mxu0 0.0
  %1251 = vmatpush.msra.mxu0 0.0
  %1252 = vmatpush.msra.mxu0 0.0
  %1253 = vmatpush.msra.mxu0 0.0
  %1254 = vmatpush.msra.mxu0 0.0
  %1255 = vmatpush.msra.mxu0 0.0
  %1256 = vmatpush.msra.mxu0 0.0
  %1257 = vmatpush.msra.mxu0 %v702
  %1258 = vmatpush.msra.mxu0 %v701
  %1259 = vmatpush.msra.mxu0 %v700
  %1260 = vmatpush.msra.mxu0 %v699
  %1261 = vmatmul.f32.gmra.mxu0 %v1243
  %v1262 = vpop.f32.mrf.mxu0
  %v1263 = vadd.f32 %v703, %v1262
  %1264 = vdwg.mxu0
  %1265 = vrot.lane.b32.xlu0 %v1177, 12
  %v1266 = vpop.permute.xlu0 %1265
  %v1268 = vmul.f32 %v352, %v1266
  %1270 = vrot.lane.b32.xlu0 %v1268, 116
  %v1271 = vpop.permute.xlu0 %1270
  %v1272 = vsel %vm56, %v1271, 0
  %1274 = vmatpush.msra.mxu0 0.0
  %1275 = vmatpush.msra.mxu0 0.0
  %1276 = vmatpush.msra.mxu0 0.0
  %1277 = vmatpush.msra.mxu0 0.0
  %1278 = vmatpush.msra.mxu0 0.0
  %1279 = vmatpush.msra.mxu0 0.0
  %1280 = vmatpush.msra.mxu0 0.0
  %1281 = vmatpush.msra.mxu0 0.0
  %1282 = vmatpush.msra.mxu0 0.0
  %1283 = vmatpush.msra.mxu0 0.0
  %1284 = vmatpush.msra.mxu0 0.0
  %1285 = vmatpush.msra.mxu0 0.0
  %1286 = vmatpush.msra.mxu0 %v690
  %1287 = vmatpush.msra.mxu0 %v689
  %1288 = vmatpush.msra.mxu0 %v688
  %1289 = vmatpush.msra.mxu0 %v687
  %1290 = vmatmul.f32.gmra.mxu0 %v1272
  %v1291 = vpop.f32.mrf.mxu0
  %v1292 = vadd.f32 0.0, %v1291
  %1293 = vdwg.mxu0
  %v1294 = vadd.f32 %v682, %v1292
  %v1295 = vxor.u32 %v1294, 2147483648
  %v1296 = vmul.f32 %v1295, 1.442695
  %v1297 = vpow.pop %v1296
  %v1298 = vadd.f32 %v1297, 1.0
  %v1299 = vrcp.pop %v1298
  %v1300 = vmul.f32 %v1298, %v1299
  %v1301 = vsub.f32 1.0, %v1300
  %v1302 = vmul.f32 %v1299, %v1301
  %v1303 = vadd.f32 %v1299, %v1302
  %vm1304 = vweird.f32 %v1298
  %vm1305 = vweird.f32 %v1299
  %vm1306 = vmor %vm1304, %vm1305
  %v1307 = vsel %vm1306, %v1299, %v1303
  %v1308 = vand.u32 2147483647, %v1298
  %vm1309 = vcmp.eq.f32.partialorder %v1308, 8.507059e+37
  %v1310 = vand.u32 %v1298, 2147483648
  %v1311 = vor.u32 1.1754944e-38, %v1310
  %v1312 = vsel %vm1309, %v1311, %v1307
  %v1313 = vmul.f32 1.0, %v1312
  %1314 = vrot.lane.b32.xlu0 %v1268, 20
  %v1315 = vpop.permute.xlu0 %1314
  %v1317 = vmul.f32 %v1313, %v1315
  %1319 = vrot.lane.b32.xlu0 %v1317, 96
  %v1320 = vpop.permute.xlu0 %1319
  %v1321 = vsel %vm56, %v1320, 0
  %1323 = vmatpush.msra.mxu0 0.0
  %1324 = vmatpush.msra.mxu0 0.0
  %1325 = vmatpush.msra.mxu0 0.0
  %1326 = vmatpush.msra.mxu0 0.0
  %1327 = vmatpush.msra.mxu0 0.0
  %1328 = vmatpush.msra.mxu0 0.0
  %1329 = vmatpush.msra.mxu0 0.0
  %1330 = vmatpush.msra.mxu0 0.0
  %1331 = vmatpush.msra.mxu0 0.0
  %1332 = vmatpush.msra.mxu0 0.0
  %1333 = vmatpush.msra.mxu0 0.0
  %1334 = vmatpush.msra.mxu0 0.0
  %1335 = vmatpush.msra.mxu0 %v694
  %1336 = vmatpush.msra.mxu0 %v693
  %1337 = vmatpush.msra.mxu0 %v692
  %1338 = vmatpush.msra.mxu0 %v691
  %1339 = vmatmul.f32.gmra.mxu0 %v1321
  %v1340 = vpop.f32.mrf.mxu0
  %v1341 = vadd.f32 0.0, %v1340
  %1342 = vdwg.mxu0
  %1344 = vrot.lane.b32.xlu0 %v1341, 64
  %v1345 = vpop.permute.xlu0 %1344
  %v1347 = vadd.f32 %v682, %v1345
  %v1348 = vtanh.pop %v1347
  %v1349 = vsub.f32 1.0, %v1313
  %v1351 = vmul.f32 %v1349, %v1271
  %1353 = vrot.lane.b32.xlu0 %v1348, 64
  %v1354 = vpop.permute.xlu0 %1353
  %v1356 = vmul.f32 %v1313, %v1354
  %v1357 = vadd.f32 %v1351, %v1356
  %v1359 = vsel %vm56, %v1357, 0
  %1361 = vmatpush.msra.mxu0 0.0
  %1362 = vmatpush.msra.mxu0 0.0
  %1363 = vmatpush.msra.mxu0 0.0
  %1364 = vmatpush.msra.mxu0 0.0
  %1365 = vmatpush.msra.mxu0 0.0
  %1366 = vmatpush.msra.mxu0 0.0
  %1367 = vmatpush.msra.mxu0 0.0
  %1368 = vmatpush.msra.mxu0 0.0
  %1369 = vmatpush.msra.mxu0 0.0
  %1370 = vmatpush.msra.mxu0 0.0
  %1371 = vmatpush.msra.mxu0 0.0
  %1372 = vmatpush.msra.mxu0 0.0
  %1373 = vmatpush.msra.mxu0 %v698
  %1374 = vmatpush.msra.mxu0 %v697
  %1375 = vmatpush.msra.mxu0 %v696
  %1376 = vmatpush.msra.mxu0 %v695
  %1377 = vmatmul.f32.gmra.mxu0 %v1359
  %v1378 = vpop.f32.mrf.mxu0
  %v1379 = vadd.f32 %v817, %v1378
  %1380 = vdwg.mxu0
  %v1381 = vadd.f32 %v1379, %v1263
  %v1382 = vxor.u32 %v1381, 2147483648
  %v1383 = vmul.f32 %v1382, 1.442695
  %v1384 = vpow.pop %v1383
  %v1385 = vadd.f32 %v1384, 1.0
  %v1386 = vrcp.pop %v1385
  %v1387 = vmul.f32 %v1385, %v1386
  %v1388 = vsub.f32 1.0, %v1387
  %v1389 = vmul.f32 %v1386, %v1388
  %v1390 = vadd.f32 %v1386, %v1389
  %vm1391 = vweird.f32 %v1385
  %vm1392 = vweird.f32 %v1386
  %vm1393 = vmor %vm1391, %vm1392
  %v1394 = vsel %vm1393, %v1386, %v1390
  %v1395 = vand.u32 2147483647, %v1385
  %vm1396 = vcmp.eq.f32.partialorder %v1395, 8.507059e+37
  %v1397 = vand.u32 %v1385, 2147483648
  %v1398 = vor.u32 1.1754944e-38, %v1397
  %v1399 = vsel %vm1396, %v1398, %v1394
  %v1400 = vmul.f32 1.0, %v1399
  %1402 = vrot.lane.b32.xlu0 %v1263, 64
  %v1403 = vpop.permute.xlu0 %1402
  %v1405 = vmul.f32 %v1400, %v1403
  %1407 = vrot.lane.b32.xlu0 %v1405, 64
  %v1408 = vpop.permute.xlu0 %1407
  %v1410 = vadd.f32 %v1379, %v1408
  %v1411 = vtanh.pop %v1410
  %v1412 = vsub.f32 1.0, %v1400
  %1414 = vrot.lane.b32.xlu0 %v1411, 96
  %v1415 = vpop.permute.xlu0 %1414
  %v1417 = vmul.f32 %v1412, %v1415
  %v1418 = vmul.f32 %v1400, %v1239
  %v1419 = vadd.f32 %v1417, %v1418
  %1421 = vrot.lane.b32.xlu0 %v1419, 96
  %v1422 = vpop.permute.xlu0 %1421
  %v1423 = vsel %vm56, %v1422, 0
  %1425 = vmatpush.msra.mxu0 0.0
  %1426 = vmatpush.msra.mxu0 0.0
  %1427 = vmatpush.msra.mxu0 0.0
  %1428 = vmatpush.msra.mxu0 0.0
  %1429 = vmatpush.msra.mxu0 0.0
  %1430 = vmatpush.msra.mxu0 0.0
  %1431 = vmatpush.msra.mxu0 0.0
  %1432 = vmatpush.msra.mxu0 0.0
  %1433 = vmatpush.msra.mxu0 0.0
  %1434 = vmatpush.msra.mxu0 0.0
  %1435 = vmatpush.msra.mxu0 0.0
  %1436 = vmatpush.msra.mxu0 0.0
  %1437 = vmatpush.msra.mxu0 %v702
  %1438 = vmatpush.msra.mxu0 %v701
  %1439 = vmatpush.msra.mxu0 %v700
  %1440 = vmatpush.msra.mxu0 %v699
  %1441 = vmatmul.f32.gmra.mxu0 %v1423
  %v1442 = vpop.f32.mrf.mxu0
  %v1443 = vadd.f32 %v703, %v1442
  %1444 = vdwg.mxu0
  %1445 = vrot.lane.b32.xlu0 %v1357, 12
  %v1446 = vpop.permute.xlu0 %1445
  %v1448 = vmul.f32 %v354, %v1446
  %1450 = vrot.lane.b32.xlu0 %v1448, 116
  %v1451 = vpop.permute.xlu0 %1450
  %v1452 = vsel %vm56, %v1451, 0
  %1454 = vmatpush.msra.mxu0 0.0
  %1455 = vmatpush.msra.mxu0 0.0
  %1456 = vmatpush.msra.mxu0 0.0
  %1457 = vmatpush.msra.mxu0 0.0
  %1458 = vmatpush.msra.mxu0 0.0
  %1459 = vmatpush.msra.mxu0 0.0
  %1460 = vmatpush.msra.mxu0 0.0
  %1461 = vmatpush.msra.mxu0 0.0
  %1462 = vmatpush.msra.mxu0 0.0
  %1463 = vmatpush.msra.mxu0 0.0
  %1464 = vmatpush.msra.mxu0 0.0
  %1465 = vmatpush.msra.mxu0 0.0
  %1466 = vmatpush.msra.mxu0 %v690
  %1467 = vmatpush.msra.mxu0 %v689
  %1468 = vmatpush.msra.mxu0 %v688
  %1469 = vmatpush.msra.mxu0 %v687
  %1470 = vmatmul.f32.gmra.mxu0 %v1452
  %v1471 = vpop.f32.mrf.mxu0
  %v1472 = vadd.f32 0.0, %v1471
  %1473 = vdwg.mxu0
  %v1474 = vadd.f32 %v683, %v1472
  %v1475 = vxor.u32 %v1474, 2147483648
  %v1476 = vmul.f32 %v1475, 1.442695
  %v1477 = vpow.pop %v1476
  %v1478 = vadd.f32 %v1477, 1.0
  %v1479 = vrcp.pop %v1478
  %v1480 = vmul.f32 %v1478, %v1479
  %v1481 = vsub.f32 1.0, %v1480
  %v1482 = vmul.f32 %v1479, %v1481
  %v1483 = vadd.f32 %v1479, %v1482
  %vm1484 = vweird.f32 %v1478
  %vm1485 = vweird.f32 %v1479
  %vm1486 = vmor %vm1484, %vm1485
  %v1487 = vsel %vm1486, %v1479, %v1483
  %v1488 = vand.u32 2147483647, %v1478
  %vm1489 = vcmp.eq.f32.partialorder %v1488, 8.507059e+37
  %v1490 = vand.u32 %v1478, 2147483648
  %v1491 = vor.u32 1.1754944e-38, %v1490
  %v1492 = vsel %vm1489, %v1491, %v1487
  %v1493 = vmul.f32 1.0, %v1492
  %1494 = vrot.lane.b32.xlu0 %v1448, 20
  %v1495 = vpop.permute.xlu0 %1494
  %v1497 = vmul.f32 %v1493, %v1495
  %1499 = vrot.lane.b32.xlu0 %v1497, 96
  %v1500 = vpop.permute.xlu0 %1499
  %v1501 = vsel %vm56, %v1500, 0
  %1503 = vmatpush.msra.mxu0 0.0
  %1504 = vmatpush.msra.mxu0 0.0
  %1505 = vmatpush.msra.mxu0 0.0
  %1506 = vmatpush.msra.mxu0 0.0
  %1507 = vmatpush.msra.mxu0 0.0
  %1508 = vmatpush.msra.mxu0 0.0
  %1509 = vmatpush.msra.mxu0 0.0
  %1510 = vmatpush.msra.mxu0 0.0
  %1511 = vmatpush.msra.mxu0 0.0
  %1512 = vmatpush.msra.mxu0 0.0
  %1513 = vmatpush.msra.mxu0 0.0
  %1514 = vmatpush.msra.mxu0 0.0
  %1515 = vmatpush.msra.mxu0 %v694
  %1516 = vmatpush.msra.mxu0 %v693
  %1517 = vmatpush.msra.mxu0 %v692
  %1518 = vmatpush.msra.mxu0 %v691
  %1519 = vmatmul.f32.gmra.mxu0 %v1501
  %v1520 = vpop.f32.mrf.mxu0
  %v1521 = vadd.f32 0.0, %v1520
  %1522 = vdwg.mxu0
  %1524 = vrot.lane.b32.xlu0 %v1521, 64
  %v1525 = vpop.permute.xlu0 %1524
  %v1527 = vadd.f32 %v683, %v1525
  %v1528 = vtanh.pop %v1527
  %v1529 = vsub.f32 1.0, %v1493
  %v1531 = vmul.f32 %v1529, %v1451
  %1533 = vrot.lane.b32.xlu0 %v1528, 64
  %v1534 = vpop.permute.xlu0 %1533
  %v1536 = vmul.f32 %v1493, %v1534
  %v1537 = vadd.f32 %v1531, %v1536
  %v1539 = vsel %vm56, %v1537, 0
  %1541 = vmatpush.msra.mxu0 0.0
  %1542 = vmatpush.msra.mxu0 0.0
  %1543 = vmatpush.msra.mxu0 0.0
  %1544 = vmatpush.msra.mxu0 0.0
  %1545 = vmatpush.msra.mxu0 0.0
  %1546 = vmatpush.msra.mxu0 0.0
  %1547 = vmatpush.msra.mxu0 0.0
  %1548 = vmatpush.msra.mxu0 0.0
  %1549 = vmatpush.msra.mxu0 0.0
  %1550 = vmatpush.msra.mxu0 0.0
  %1551 = vmatpush.msra.mxu0 0.0
  %1552 = vmatpush.msra.mxu0 0.0
  %1553 = vmatpush.msra.mxu0 %v698
  %1554 = vmatpush.msra.mxu0 %v697
  %1555 = vmatpush.msra.mxu0 %v696
  %1556 = vmatpush.msra.mxu0 %v695
  %1557 = vmatmul.f32.gmra.mxu0 %v1539
  %v1558 = vpop.f32.mrf.mxu0
  %v1559 = vadd.f32 %v817, %v1558
  %1560 = vdwg.mxu0
  %v1561 = vadd.f32 %v1559, %v1443
  %v1562 = vxor.u32 %v1561, 2147483648
  %v1563 = vmul.f32 %v1562, 1.442695
  %v1564 = vpow.pop %v1563
  %v1565 = vadd.f32 %v1564, 1.0
  %v1566 = vrcp.pop %v1565
  %v1567 = vmul.f32 %v1565, %v1566
  %v1568 = vsub.f32 1.0, %v1567
  %v1569 = vmul.f32 %v1566, %v1568
  %v1570 = vadd.f32 %v1566, %v1569
  %vm1571 = vweird.f32 %v1565
  %vm1572 = vweird.f32 %v1566
  %vm1573 = vmor %vm1571, %vm1572
  %v1574 = vsel %vm1573, %v1566, %v1570
  %v1575 = vand.u32 2147483647, %v1565
  %vm1576 = vcmp.eq.f32.partialorder %v1575, 8.507059e+37
  %v1577 = vand.u32 %v1565, 2147483648
  %v1578 = vor.u32 1.1754944e-38, %v1577
  %v1579 = vsel %vm1576, %v1578, %v1574
  %v1580 = vmul.f32 1.0, %v1579
  %1582 = vrot.lane.b32.xlu0 %v1443, 64
  %v1583 = vpop.permute.xlu0 %1582
  %v1585 = vmul.f32 %v1580, %v1583
  %1587 = vrot.lane.b32.xlu0 %v1585, 64
  %v1588 = vpop.permute.xlu0 %1587
  %v1590 = vadd.f32 %v1559, %v1588
  %v1591 = vtanh.pop %v1590
  %v1592 = vsub.f32 1.0, %v1580
  %1594 = vrot.lane.b32.xlu0 %v1591, 96
  %v1595 = vpop.permute.xlu0 %1594
  %v1597 = vmul.f32 %v1592, %v1595
  %v1598 = vmul.f32 %v1580, %v1419
  %v1599 = vadd.f32 %v1597, %v1598
  %1601 = vrot.lane.b32.xlu0 %v1599, 96
  %v1602 = vpop.permute.xlu0 %1601
  %v1603 = vsel %vm56, %v1602, 0
  %1605 = vmatpush.msra.mxu0 0.0
  %1606 = vmatpush.msra.mxu0 0.0
  %1607 = vmatpush.msra.mxu0 0.0
  %1608 = vmatpush.msra.mxu0 0.0
  %1609 = vmatpush.msra.mxu0 0.0
  %1610 = vmatpush.msra.mxu0 0.0
  %1611 = vmatpush.msra.mxu0 0.0
  %1612 = vmatpush.msra.mxu0 0.0
  %1613 = vmatpush.msra.mxu0 0.0
  %1614 = vmatpush.msra.mxu0 0.0
  %1615 = vmatpush.msra.mxu0 0.0
  %1616 = vmatpush.msra.mxu0 0.0
  %1617 = vmatpush.msra.mxu0 %v702
  %1618 = vmatpush.msra.mxu0 %v701
  %1619 = vmatpush.msra.mxu0 %v700
  %1620 = vmatpush.msra.mxu0 %v699
  %1621 = vmatmul.f32.gmra.mxu0 %v1603
  %v1622 = vpop.f32.mrf.mxu0
  %v1623 = vadd.f32 %v703, %v1622
  %1624 = vdwg.mxu0
  %1625 = vrot.lane.b32.xlu0 %v1537, 12
  %v1626 = vpop.permute.xlu0 %1625
  %v1628 = vmul.f32 %v356, %v1626
  %1630 = vrot.lane.b32.xlu0 %v1628, 116
  %v1631 = vpop.permute.xlu0 %1630
  %v1632 = vsel %vm56, %v1631, 0
  %1634 = vmatpush.msra.mxu0 0.0
  %1635 = vmatpush.msra.mxu0 0.0
  %1636 = vmatpush.msra.mxu0 0.0
  %1637 = vmatpush.msra.mxu0 0.0
  %1638 = vmatpush.msra.mxu0 0.0
  %1639 = vmatpush.msra.mxu0 0.0
  %1640 = vmatpush.msra.mxu0 0.0
  %1641 = vmatpush.msra.mxu0 0.0
  %1642 = vmatpush.msra.mxu0 0.0
  %1643 = vmatpush.msra.mxu0 0.0
  %1644 = vmatpush.msra.mxu0 0.0
  %1645 = vmatpush.msra.mxu0 0.0
  %1646 = vmatpush.msra.mxu0 %v690
  %1647 = vmatpush.msra.mxu0 %v689
  %1648 = vmatpush.msra.mxu0 %v688
  %1649 = vmatpush.msra.mxu0 %v687
  %1650 = vmatmul.f32.gmra.mxu0 %v1632
  %v1651 = vpop.f32.mrf.mxu0
  %v1652 = vadd.f32 0.0, %v1651
  %1653 = vdwg.mxu0
  %v1654 = vadd.f32 %v684, %v1652
  %v1655 = vxor.u32 %v1654, 2147483648
  %v1656 = vmul.f32 %v1655, 1.442695
  %v1657 = vpow.pop %v1656
  %v1658 = vadd.f32 %v1657, 1.0
  %v1659 = vrcp.pop %v1658
  %v1660 = vmul.f32 %v1658, %v1659
  %v1661 = vsub.f32 1.0, %v1660
  %v1662 = vmul.f32 %v1659, %v1661
  %v1663 = vadd.f32 %v1659, %v1662
  %vm1664 = vweird.f32 %v1658
  %vm1665 = vweird.f32 %v1659
  %vm1666 = vmor %vm1664, %vm1665
  %v1667 = vsel %vm1666, %v1659, %v1663
  %v1668 = vand.u32 2147483647, %v1658
  %vm1669 = vcmp.eq.f32.partialorder %v1668, 8.507059e+37
  %v1670 = vand.u32 %v1658, 2147483648
  %v1671 = vor.u32 1.1754944e-38, %v1670
  %v1672 = vsel %vm1669, %v1671, %v1667
  %v1673 = vmul.f32 1.0, %v1672
  %1674 = vrot.lane.b32.xlu0 %v1628, 20
  %v1675 = vpop.permute.xlu0 %1674
  %v1677 = vmul.f32 %v1673, %v1675
  %1679 = vrot.lane.b32.xlu0 %v1677, 96
  %v1680 = vpop.permute.xlu0 %1679
  %v1681 = vsel %vm56, %v1680, 0
  %1683 = vmatpush.msra.mxu0 0.0
  %1684 = vmatpush.msra.mxu0 0.0
  %1685 = vmatpush.msra.mxu0 0.0
  %1686 = vmatpush.msra.mxu0 0.0
  %1687 = vmatpush.msra.mxu0 0.0
  %1688 = vmatpush.msra.mxu0 0.0
  %1689 = vmatpush.msra.mxu0 0.0
  %1690 = vmatpush.msra.mxu0 0.0
  %1691 = vmatpush.msra.mxu0 0.0
  %1692 = vmatpush.msra.mxu0 0.0
  %1693 = vmatpush.msra.mxu0 0.0
  %1694 = vmatpush.msra.mxu0 0.0
  %1695 = vmatpush.msra.mxu0 %v694
  %1696 = vmatpush.msra.mxu0 %v693
  %1697 = vmatpush.msra.mxu0 %v692
  %1698 = vmatpush.msra.mxu0 %v691
  %1699 = vmatmul.f32.gmra.mxu0 %v1681
  %v1700 = vpop.f32.mrf.mxu0
  %v1701 = vadd.f32 0.0, %v1700
  %1702 = vdwg.mxu0
  %1704 = vrot.lane.b32.xlu0 %v1701, 64
  %v1705 = vpop.permute.xlu0 %1704
  %v1707 = vadd.f32 %v684, %v1705
  %v1708 = vtanh.pop %v1707
  %v1709 = vsub.f32 1.0, %v1673
  %v1711 = vmul.f32 %v1709, %v1631
  %1713 = vrot.lane.b32.xlu0 %v1708, 64
  %v1714 = vpop.permute.xlu0 %1713
  %v1716 = vmul.f32 %v1673, %v1714
  %v1717 = vadd.f32 %v1711, %v1716
  %v1719 = vsel %vm56, %v1717, 0
  %1721 = vmatpush.msra.mxu0 0.0
  %1722 = vmatpush.msra.mxu0 0.0
  %1723 = vmatpush.msra.mxu0 0.0
  %1724 = vmatpush.msra.mxu0 0.0
  %1725 = vmatpush.msra.mxu0 0.0
  %1726 = vmatpush.msra.mxu0 0.0
  %1727 = vmatpush.msra.mxu0 0.0
  %1728 = vmatpush.msra.mxu0 0.0
  %1729 = vmatpush.msra.mxu0 0.0
  %1730 = vmatpush.msra.mxu0 0.0
  %1731 = vmatpush.msra.mxu0 0.0
  %1732 = vmatpush.msra.mxu0 0.0
  %1733 = vmatpush.msra.mxu0 %v698
  %1734 = vmatpush.msra.mxu0 %v697
  %1735 = vmatpush.msra.mxu0 %v696
  %1736 = vmatpush.msra.mxu0 %v695
  %1737 = vmatmul.f32.gmra.mxu0 %v1719
  %v1738 = vpop.f32.mrf.mxu0
  %v1739 = vadd.f32 %v817, %v1738
  %1740 = vdwg.mxu0
  %v1741 = vadd.f32 %v1739, %v1623
  %v1742 = vxor.u32 %v1741, 2147483648
  %v1743 = vmul.f32 %v1742, 1.442695
  %v1744 = vpow.pop %v1743
  %v1745 = vadd.f32 %v1744, 1.0
  %v1746 = vrcp.pop %v1745
  %v1747 = vmul.f32 %v1745, %v1746
  %v1748 = vsub.f32 1.0, %v1747
  %v1749 = vmul.f32 %v1746, %v1748
  %v1750 = vadd.f32 %v1746, %v1749
  %vm1751 = vweird.f32 %v1745
  %vm1752 = vweird.f32 %v1746
  %vm1753 = vmor %vm1751, %vm1752
  %v1754 = vsel %vm1753, %v1746, %v1750
  %v1755 = vand.u32 2147483647, %v1745
  %vm1756 = vcmp.eq.f32.partialorder %v1755, 8.507059e+37
  %v1757 = vand.u32 %v1745, 2147483648
  %v1758 = vor.u32 1.1754944e-38, %v1757
  %v1759 = vsel %vm1756, %v1758, %v1754
  %v1760 = vmul.f32 1.0, %v1759
  %1762 = vrot.lane.b32.xlu0 %v1623, 64
  %v1763 = vpop.permute.xlu0 %1762
  %v1765 = vmul.f32 %v1760, %v1763
  %1767 = vrot.lane.b32.xlu0 %v1765, 64
  %v1768 = vpop.permute.xlu0 %1767
  %v1770 = vadd.f32 %v1739, %v1768
  %v1771 = vtanh.pop %v1770
  %v1772 = vsub.f32 1.0, %v1760
  %1774 = vrot.lane.b32.xlu0 %v1771, 96
  %v1775 = vpop.permute.xlu0 %1774
  %v1777 = vmul.f32 %v1772, %v1775
  %v1778 = vmul.f32 %v1760, %v1599
  %v1779 = vadd.f32 %v1777, %v1778
  %1781 = vrot.lane.b32.xlu0 %v1779, 96
  %v1782 = vpop.permute.xlu0 %1781
  %v1783 = vsel %vm56, %v1782, 0
  %1785 = vmatpush.msra.mxu0 0.0
  %1786 = vmatpush.msra.mxu0 0.0
  %1787 = vmatpush.msra.mxu0 0.0
  %1788 = vmatpush.msra.mxu0 0.0
  %1789 = vmatpush.msra.mxu0 0.0
  %1790 = vmatpush.msra.mxu0 0.0
  %1791 = vmatpush.msra.mxu0 0.0
  %1792 = vmatpush.msra.mxu0 0.0
  %1793 = vmatpush.msra.mxu0 0.0
  %1794 = vmatpush.msra.mxu0 0.0
  %1795 = vmatpush.msra.mxu0 0.0
  %1796 = vmatpush.msra.mxu0 0.0
  %1797 = vmatpush.msra.mxu0 %v702
  %1798 = vmatpush.msra.mxu0 %v701
  %1799 = vmatpush.msra.mxu0 %v700
  %1800 = vmatpush.msra.mxu0 %v699
  %1801 = vmatmul.f32.gmra.mxu0 %v1783
  %v1802 = vpop.f32.mrf.mxu0
  %v1803 = vadd.f32 %v703, %v1802
  %1804 = vdwg.mxu0
  %1805 = vrot.lane.b32.xlu0 %v1717, 12
  %v1806 = vpop.permute.xlu0 %1805
  %v1808 = vmul.f32 %v358, %v1806
  %1810 = vrot.lane.b32.xlu0 %v1808, 116
  %v1811 = vpop.permute.xlu0 %1810
  %v1812 = vsel %vm56, %v1811, 0
  %1814 = vmatpush.msra.mxu0 0.0
  %1815 = vmatpush.msra.mxu0 0.0
  %1816 = vmatpush.msra.mxu0 0.0
  %1817 = vmatpush.msra.mxu0 0.0
  %1818 = vmatpush.msra.mxu0 0.0
  %1819 = vmatpush.msra.mxu0 0.0
  %1820 = vmatpush.msra.mxu0 0.0
  %1821 = vmatpush.msra.mxu0 0.0
  %1822 = vmatpush.msra.mxu0 0.0
  %1823 = vmatpush.msra.mxu0 0.0
  %1824 = vmatpush.msra.mxu0 0.0
  %1825 = vmatpush.msra.mxu0 0.0
  %1826 = vmatpush.msra.mxu0 %v690
  %1827 = vmatpush.msra.mxu0 %v689
  %1828 = vmatpush.msra.mxu0 %v688
  %1829 = vmatpush.msra.mxu0 %v687
  %1830 = vmatmul.f32.gmra.mxu0 %v1812
  %v1831 = vpop.f32.mrf.mxu0
  %v1832 = vadd.f32 0.0, %v1831
  %1833 = vdwg.mxu0
  %v1834 = vadd.f32 %v685, %v1832
  %v1835 = vxor.u32 %v1834, 2147483648
  %v1836 = vmul.f32 %v1835, 1.442695
  %v1837 = vpow.pop %v1836
  %v1838 = vadd.f32 %v1837, 1.0
  %v1839 = vrcp.pop %v1838
  %v1840 = vmul.f32 %v1838, %v1839
  %v1841 = vsub.f32 1.0, %v1840
  %v1842 = vmul.f32 %v1839, %v1841
  %v1843 = vadd.f32 %v1839, %v1842
  %vm1844 = vweird.f32 %v1838
  %vm1845 = vweird.f32 %v1839
  %vm1846 = vmor %vm1844, %vm1845
  %v1847 = vsel %vm1846, %v1839, %v1843
  %v1848 = vand.u32 2147483647, %v1838
  %vm1849 = vcmp.eq.f32.partialorder %v1848, 8.507059e+37
  %v1850 = vand.u32 %v1838, 2147483648
  %v1851 = vor.u32 1.1754944e-38, %v1850
  %v1852 = vsel %vm1849, %v1851, %v1847
  %v1853 = vmul.f32 1.0, %v1852
  %1854 = vrot.lane.b32.xlu0 %v1808, 20
  %v1855 = vpop.permute.xlu0 %1854
  %v1857 = vmul.f32 %v1853, %v1855
  %1859 = vrot.lane.b32.xlu0 %v1857, 96
  %v1860 = vpop.permute.xlu0 %1859
  %v1861 = vsel %vm56, %v1860, 0
  %1863 = vmatpush.msra.mxu0 0.0
  %1864 = vmatpush.msra.mxu0 0.0
  %1865 = vmatpush.msra.mxu0 0.0
  %1866 = vmatpush.msra.mxu0 0.0
  %1867 = vmatpush.msra.mxu0 0.0
  %1868 = vmatpush.msra.mxu0 0.0
  %1869 = vmatpush.msra.mxu0 0.0
  %1870 = vmatpush.msra.mxu0 0.0
  %1871 = vmatpush.msra.mxu0 0.0
  %1872 = vmatpush.msra.mxu0 0.0
  %1873 = vmatpush.msra.mxu0 0.0
  %1874 = vmatpush.msra.mxu0 0.0
  %1875 = vmatpush.msra.mxu0 %v694
  %1876 = vmatpush.msra.mxu0 %v693
  %1877 = vmatpush.msra.mxu0 %v692
  %1878 = vmatpush.msra.mxu0 %v691
  %1879 = vmatmul.f32.gmra.mxu0 %v1861
  %v1880 = vpop.f32.mrf.mxu0
  %v1881 = vadd.f32 0.0, %v1880
  %1882 = vdwg.mxu0
  %1884 = vrot.lane.b32.xlu0 %v1881, 64
  %v1885 = vpop.permute.xlu0 %1884
  %v1887 = vadd.f32 %v685, %v1885
  %v1888 = vtanh.pop %v1887
  %v1889 = vsub.f32 1.0, %v1853
  %v1891 = vmul.f32 %v1889, %v1811
  %1893 = vrot.lane.b32.xlu0 %v1888, 64
  %v1894 = vpop.permute.xlu0 %1893
  %v1896 = vmul.f32 %v1853, %v1894
  %v1897 = vadd.f32 %v1891, %v1896
  %v1899 = vsel %vm56, %v1897, 0
  %1901 = vmatpush.msra.mxu0 0.0
  %1902 = vmatpush.msra.mxu0 0.0
  %1903 = vmatpush.msra.mxu0 0.0
  %1904 = vmatpush.msra.mxu0 0.0
  %1905 = vmatpush.msra.mxu0 0.0
  %1906 = vmatpush.msra.mxu0 0.0
  %1907 = vmatpush.msra.mxu0 0.0
  %1908 = vmatpush.msra.mxu0 0.0
  %1909 = vmatpush.msra.mxu0 0.0
  %1910 = vmatpush.msra.mxu0 0.0
  %1911 = vmatpush.msra.mxu0 0.0
  %1912 = vmatpush.msra.mxu0 0.0
  %1913 = vmatpush.msra.mxu0 %v698
  %1914 = vmatpush.msra.mxu0 %v697
  %1915 = vmatpush.msra.mxu0 %v696
  %1916 = vmatpush.msra.mxu0 %v695
  %1917 = vmatmul.f32.gmra.mxu0 %v1899
  %v1918 = vpop.f32.mrf.mxu0
  %v1919 = vadd.f32 %v817, %v1918
  %1920 = vdwg.mxu0
  %v1921 = vadd.f32 %v1919, %v1803
  %v1922 = vxor.u32 %v1921, 2147483648
  %v1923 = vmul.f32 %v1922, 1.442695
  %v1924 = vpow.pop %v1923
  %v1925 = vadd.f32 %v1924, 1.0
  %v1926 = vrcp.pop %v1925
  %v1927 = vmul.f32 %v1925, %v1926
  %v1928 = vsub.f32 1.0, %v1927
  %v1929 = vmul.f32 %v1926, %v1928
  %v1930 = vadd.f32 %v1926, %v1929
  %vm1931 = vweird.f32 %v1925
  %vm1932 = vweird.f32 %v1926
  %vm1933 = vmor %vm1931, %vm1932
  %v1934 = vsel %vm1933, %v1926, %v1930
  %v1935 = vand.u32 2147483647, %v1925
  %vm1936 = vcmp.eq.f32.partialorder %v1935, 8.507059e+37
  %v1937 = vand.u32 %v1925, 2147483648
  %v1938 = vor.u32 1.1754944e-38, %v1937
  %v1939 = vsel %vm1936, %v1938, %v1934
  %v1940 = vmul.f32 1.0, %v1939
  %1942 = vrot.lane.b32.xlu0 %v1803, 64
  %v1943 = vpop.permute.xlu0 %1942
  %v1945 = vmul.f32 %v1940, %v1943
  %1947 = vrot.lane.b32.xlu0 %v1945, 64
  %v1948 = vpop.permute.xlu0 %1947
  %v1950 = vadd.f32 %v1919, %v1948
  %v1951 = vtanh.pop %v1950
  %v1952 = vsub.f32 1.0, %v1940
  %1954 = vrot.lane.b32.xlu0 %v1951, 96
  %v1955 = vpop.permute.xlu0 %1954
  %v1957 = vmul.f32 %v1952, %v1955
  %v1958 = vmul.f32 %v1940, %v1779
  %v1959 = vadd.f32 %v1957, %v1958
  %1961 = vrot.lane.b32.xlu0 %v1959, 96
  %v1962 = vpop.permute.xlu0 %1961
  %v1963 = vsel %vm56, %v1962, 0
  %1965 = vmatpush.msra.mxu0 0.0
  %1966 = vmatpush.msra.mxu0 0.0
  %1967 = vmatpush.msra.mxu0 0.0
  %1968 = vmatpush.msra.mxu0 0.0
  %1969 = vmatpush.msra.mxu0 0.0
  %1970 = vmatpush.msra.mxu0 0.0
  %1971 = vmatpush.msra.mxu0 0.0
  %1972 = vmatpush.msra.mxu0 0.0
  %1973 = vmatpush.msra.mxu0 0.0
  %1974 = vmatpush.msra.mxu0 0.0
  %1975 = vmatpush.msra.mxu0 0.0
  %1976 = vmatpush.msra.mxu0 0.0
  %1977 = vmatpush.msra.mxu0 %v702
  %1978 = vmatpush.msra.mxu0 %v701
  %1979 = vmatpush.msra.mxu0 %v700
  %1980 = vmatpush.msra.mxu0 %v699
  %1981 = vmatmul.f32.gmra.mxu0 %v1963
  %v1982 = vpop.f32.mrf.mxu0
  %v1983 = vadd.f32 %v703, %v1982
  %1984 = vdwg.mxu0
  %1985 = vrot.lane.b32.xlu0 %v1897, 12
  %v1986 = vpop.permute.xlu0 %1985
  %v1988 = vmul.f32 %v360, %v1986
  %1990 = vrot.lane.b32.xlu0 %v1988, 116
  %v1991 = vpop.permute.xlu0 %1990
  %v1992 = vsel %vm56, %v1991, 0
  %1994 = vmatpush.msra.mxu0 0.0
  %1995 = vmatpush.msra.mxu0 0.0
  %1996 = vmatpush.msra.mxu0 0.0
  %1997 = vmatpush.msra.mxu0 0.0
  %1998 = vmatpush.msra.mxu0 0.0
  %1999 = vmatpush.msra.mxu0 0.0
  %2000 = vmatpush.msra.mxu0 0.0
  %2001 = vmatpush.msra.mxu0 0.0
  %2002 = vmatpush.msra.mxu0 0.0
  %2003 = vmatpush.msra.mxu0 0.0
  %2004 = vmatpush.msra.mxu0 0.0
  %2005 = vmatpush.msra.mxu0 0.0
  %2006 = vmatpush.msra.mxu0 %v690
  %2007 = vmatpush.msra.mxu0 %v689
  %2008 = vmatpush.msra.mxu0 %v688
  %2009 = vmatpush.msra.mxu0 %v687
  %2010 = vmatmul.f32.gmra.mxu0 %v1992
  %v2011 = vpop.f32.mrf.mxu0
  %v2012 = vadd.f32 0.0, %v2011
  %2013 = vdwg.mxu0
  %v2014 = vadd.f32 %v686, %v2012
  %v2015 = vxor.u32 %v2014, 2147483648
  %v2016 = vmul.f32 %v2015, 1.442695
  %v2017 = vpow.pop %v2016
  %v2018 = vadd.f32 %v2017, 1.0
  %v2019 = vrcp.pop %v2018
  %v2020 = vmul.f32 %v2018, %v2019
  %v2021 = vsub.f32 1.0, %v2020
  %v2022 = vmul.f32 %v2019, %v2021
  %v2023 = vadd.f32 %v2019, %v2022
  %vm2024 = vweird.f32 %v2018
  %vm2025 = vweird.f32 %v2019
  %vm2026 = vmor %vm2024, %vm2025
  %v2027 = vsel %vm2026, %v2019, %v2023
  %v2028 = vand.u32 2147483647, %v2018
  %vm2029 = vcmp.eq.f32.partialorder %v2028, 8.507059e+37
  %v2030 = vand.u32 %v2018, 2147483648
  %v2031 = vor.u32 1.1754944e-38, %v2030
  %v2032 = vsel %vm2029, %v2031, %v2027
  %v2033 = vmul.f32 1.0, %v2032
  %2034 = vrot.lane.b32.xlu0 %v1988, 20
  %v2035 = vpop.permute.xlu0 %2034
  %v2037 = vmul.f32 %v2033, %v2035
  %2039 = vrot.lane.b32.xlu0 %v2037, 96
  %v2040 = vpop.permute.xlu0 %2039
  %v2041 = vsel %vm56, %v2040, 0
  %2043 = vmatpush.msra.mxu0 0.0
  %2044 = vmatpush.msra.mxu0 0.0
  %2045 = vmatpush.msra.mxu0 0.0
  %2046 = vmatpush.msra.mxu0 0.0
  %2047 = vmatpush.msra.mxu0 0.0
  %2048 = vmatpush.msra.mxu0 0.0
  %2049 = vmatpush.msra.mxu0 0.0
  %2050 = vmatpush.msra.mxu0 0.0
  %2051 = vmatpush.msra.mxu0 0.0
  %2052 = vmatpush.msra.mxu0 0.0
  %2053 = vmatpush.msra.mxu0 0.0
  %2054 = vmatpush.msra.mxu0 0.0
  %2055 = vmatpush.msra.mxu0 %v694
  %2056 = vmatpush.msra.mxu0 %v693
  %2057 = vmatpush.msra.mxu0 %v692
  %2058 = vmatpush.msra.mxu0 %v691
  %2059 = vmatmul.f32.gmra.mxu0 %v2041
  %v2060 = vpop.f32.mrf.mxu0
  %v2061 = vadd.f32 0.0, %v2060
  %2062 = vdwg.mxu0
  %2064 = vrot.lane.b32.xlu0 %v2061, 64
  %v2065 = vpop.permute.xlu0 %2064
  %v2067 = vadd.f32 %v686, %v2065
  %v2068 = vtanh.pop %v2067
  %v2069 = vsub.f32 1.0, %v2033
  %v2071 = vmul.f32 %v2069, %v1991
  %2073 = vrot.lane.b32.xlu0 %v2068, 64
  %v2074 = vpop.permute.xlu0 %2073
  %v2076 = vmul.f32 %v2033, %v2074
  %v2077 = vadd.f32 %v2071, %v2076
  %v2079 = vsel %vm56, %v2077, 0
  %2081 = vmatpush.msra.mxu0 0.0
  %2082 = vmatpush.msra.mxu0 0.0
  %2083 = vmatpush.msra.mxu0 0.0
  %2084 = vmatpush.msra.mxu0 0.0
  %2085 = vmatpush.msra.mxu0 0.0
  %2086 = vmatpush.msra.mxu0 0.0
  %2087 = vmatpush.msra.mxu0 0.0
  %2088 = vmatpush.msra.mxu0 0.0
  %2089 = vmatpush.msra.mxu0 0.0
  %2090 = vmatpush.msra.mxu0 0.0
  %2091 = vmatpush.msra.mxu0 0.0
  %2092 = vmatpush.msra.mxu0 0.0
  %2093 = vmatpush.msra.mxu0 %v698
  %2094 = vmatpush.msra.mxu0 %v697
  %2095 = vmatpush.msra.mxu0 %v696
  %2096 = vmatpush.msra.mxu0 %v695
  %2097 = vmatmul.f32.gmra.mxu0 %v2079
  %v2098 = vpop.f32.mrf.mxu0
  %v2099 = vadd.f32 %v817, %v2098
  %2100 = vdwg.mxu0
  %v2101 = vadd.f32 %v2099, %v1983
  %v2102 = vxor.u32 %v2101, 2147483648
  %v2103 = vmul.f32 %v2102, 1.442695
  %v2104 = vpow.pop %v2103
  %v2105 = vadd.f32 %v2104, 1.0
  %v2106 = vrcp.pop %v2105
  %v2107 = vmul.f32 %v2105, %v2106
  %v2108 = vsub.f32 1.0, %v2107
  %v2109 = vmul.f32 %v2106, %v2108
  %v2110 = vadd.f32 %v2106, %v2109
  %vm2111 = vweird.f32 %v2105
  %vm2112 = vweird.f32 %v2106
  %vm2113 = vmor %vm2111, %vm2112
  %v2114 = vsel %vm2113, %v2106, %v2110
  %v2115 = vand.u32 2147483647, %v2105
  %vm2116 = vcmp.eq.f32.partialorder %v2115, 8.507059e+37
  %v2117 = vand.u32 %v2105, 2147483648
  %v2118 = vor.u32 1.1754944e-38, %v2117
  %v2119 = vsel %vm2116, %v2118, %v2114
  %v2120 = vmul.f32 1.0, %v2119
  %2122 = vrot.lane.b32.xlu0 %v1983, 64
  %v2123 = vpop.permute.xlu0 %2122
  %v2125 = vmul.f32 %v2120, %v2123
  %2127 = vrot.lane.b32.xlu0 %v2125, 64
  %v2128 = vpop.permute.xlu0 %2127
  %v2130 = vadd.f32 %v2099, %v2128
  %v2131 = vtanh.pop %v2130
  %v2132 = vsub.f32 1.0, %v2120
  %2134 = vrot.lane.b32.xlu0 %v2131, 96
  %v2135 = vpop.permute.xlu0 %2134
  %v2137 = vmul.f32 %v2132, %v2135
  %v2138 = vmul.f32 %v2120, %v1959
  %v2139 = vadd.f32 %v2137, %v2138
  %v2140 = vld [vmem:[%s1 + $0xf0] sm:$0xff]
  %v2141 = vld [vmem:[%s1 + $0xf8] sm:$0xff]
  %v2142 = vld [vmem:[%s1 + $0x100] sm:$0xff]
  %v2143 = vld [vmem:[%s1 + $0x108] sm:$0xff]
  %v2144 = vld [vmem:[%s1 + $0x110] sm:$0xff]
  %v2145 = vld [vmem:[%s1 + $0x118] sm:$0xff]
  %2147 = vrot.lane.b32.xlu0 %v2139, 96
  %v2148 = vpop.permute.xlu0 %2147
  %v2149 = vsel %vm56, %v2148, 0
  %2151 = vmatpush.msra.mxu0 0.0
  %2152 = vmatpush.msra.mxu0 0.0
  %2153 = vmatpush.msra.mxu0 0.0
  %2154 = vmatpush.msra.mxu0 0.0
  %2155 = vmatpush.msra.mxu0 0.0
  %2156 = vmatpush.msra.mxu0 0.0
  %2157 = vmatpush.msra.mxu0 0.0
  %2158 = vmatpush.msra.mxu0 0.0
  %2159 = vmatpush.msra.mxu0 0.0
  %2160 = vmatpush.msra.mxu0 0.0
  %2161 = vmatpush.msra.mxu0 0.0
  %2162 = vmatpush.msra.mxu0 0.0
  %2163 = vmatpush.msra.mxu0 %v2145
  %2164 = vmatpush.msra.mxu0 %v2144
  %2165 = vmatpush.msra.mxu0 %v2143
  %2166 = vmatpush.msra.mxu0 %v2142
  %2167 = vmatmul.f32.gmra.mxu0 %v2149
  %v2168 = vpop.f32.mrf.mxu0
  %v2169 = vadd.f32 0.0, %v2168
  %2170 = vdwg.mxu0
  %v2172 = vsel %vm26, %v80, 0
  %2174 = vmatpush.msra.mxu0 0.0
  %2175 = vmatpush.msra.mxu0 0.0
  %2176 = vmatpush.msra.mxu0 0.0
  %2177 = vmatpush.msra.mxu0 0.0
  %2178 = vmatpush.msra.mxu0 0.0
  %2179 = vmatpush.msra.mxu0 0.0
  %2180 = vmatpush.msra.mxu0 0.0
  %2181 = vmatpush.msra.mxu0 0.0
  %2182 = vmatpush.msra.mxu0 0.0
  %2183 = vmatpush.msra.mxu0 0.0
  %2184 = vmatpush.msra.mxu0 0.0
  %2185 = vmatpush.msra.mxu0 0.0
  %2186 = vmatpush.msra.mxu0 0.0
  %2187 = vmatpush.msra.mxu0 0.0
  %2188 = vmatpush.msra.mxu0 %v2141
  %2189 = vmatpush.msra.mxu0 %v2140
  %2190 = vmatmul.f32.gmra.mxu0 %v2172
  %v2191 = vpop.f32.mrf.mxu0
  %v2192 = vadd.f32 %v2169, %v2191
  %2193 = vdwg.mxu0
  %v2194 = vperm.slane %v11, 7
  %v2195 = vadd.f32 %v2192, %v2194
  %v2196 = vmax.f32 %v2195, 0.0
  %v2197 = vld [vmem:[%s1 + $0x120] sm:$0xff]
  %v2198 = vld [vmem:[%s1 + $0x128] sm:$0xff]
  %v2199 = vld [vmem:[%s1 + $0x130] sm:$0xff]
  %v2200 = vld [vmem:[%s1 + $0x138] sm:$0xff]
  %v2201 = vperm.slane %v12, 0
  %v2203 = vsel %vm56, %v2196, 0
  %2205 = vmatpush.msra.mxu0 0.0
  %2206 = vmatpush.msra.mxu0 0.0
  %2207 = vmatpush.msra.mxu0 0.0
  %2208 = vmatpush.msra.mxu0 0.0
  %2209 = vmatpush.msra.mxu0 0.0
  %2210 = vmatpush.msra.mxu0 0.0
  %2211 = vmatpush.msra.mxu0 0.0
  %2212 = vmatpush.msra.mxu0 0.0
  %2213 = vmatpush.msra.mxu0 0.0
  %2214 = vmatpush.msra.mxu0 0.0
  %2215 = vmatpush.msra.mxu0 0.0
  %2216 = vmatpush.msra.mxu0 0.0
  %2217 = vmatpush.msra.mxu0 %v2200
  %2218 = vmatpush.msra.mxu0 %v2199
  %2219 = vmatpush.msra.mxu0 %v2198
  %2220 = vmatpush.msra.mxu0 %v2197
  %2221 = vmatmul.f32.gmra.mxu0 %v2203
  %v2222 = vpop.f32.mrf.mxu0
  %v2223 = vadd.f32 %v2201, %v2222
  %2224 = vdwg.mxu0
  %vm2225 = vcmask 39936
  %2226 = vst.msk [vmem:[%s2] sm:$0xff] %vm2225, %v2223
  // Predicated region
  $region10: #{forward.1} parent=0 // pred_check
    _
  $region11: #{forward.1} parent=0 // pred_check_branch
    %2228 = sbr.rel (0) target = $region13
  $region12: #{forward.1} parent=0 // pred_region
    _
  $region13: #{forward.1} parent=0 // pred_fallthru
    _
  // Predicated region
  $region14: #{forward.1} parent=0 // pred_check
    _
  $region15: #{forward.1} parent=0 // pred_check_branch
    %2230 = sbr.rel (0) target = $region17
  $region16: #{forward.1} parent=0 // pred_region
    _
  $region17: #{forward.1} parent=0 // pred_fallthru
    _

</llo_original>
